<compile_context>
chip_gen: v7x
topology: tpu7x:2x2x1
jax: 0.10.0
libtpu: 0.0.40
codegen_flags: <defaults>
</compile_context>

<pallas_src>
import jax
import jax.numpy as jnp
from jax.experimental import pallas as pl
from jax.experimental.pallas import tpu as pltpu


def _mlp_kernel(x_ref, w1_ref, b1_ref, w2_ref, b2_ref, o_ref):
    """One batch tile of relu(x @ W1eT + b1) @ W2e + b2 in packed layout.

    x_ref:  [bt, k_in]            (k_in = spr*input_dim; lane-dense when packed)
    w1_ref: [k_in, spr*H]         block-diagonal expansion of w1.T
    b1_ref: [1, spr*H]            broadcasts over the sublane (batch) axis
    w2_ref: [spr*H, spr*out]      block-diagonal expansion of w2.T (kept f32)
    b2_ref: [1, spr*out]
    o_ref:  [bt, spr*out]         flattens row-major to [bt*spr, out]
    """
    h = jnp.dot(x_ref[...], w1_ref[...], preferred_element_type=jnp.float32)
    h = jnp.maximum(h + b1_ref[...], 0.0)                    # f32 bias + ReLU (VPU)
    out = jnp.dot(h, w2_ref[...], preferred_element_type=jnp.float32)
    o_ref[...] = (out + b2_ref[...]).astype(o_ref.dtype)


def _round_up(n, m):
    return (n + m - 1) // m * m


_SMALL_BATCH = 512              # below this, skip Pallas (launch overhead dominates)
_MAX_ROW_TILE = 1024            # packed rows / grid step (~10 MiB VMEM incl. temporaries)
_VMEM_LIMIT = 40 * 1024 * 1024  # explicit; well above per-step need, below v7x's 64 MiB


def _pick_row_tile(n_rows):
    if n_rows <= _MAX_ROW_TILE:
        return _round_up(max(n_rows, 8), 8)        # single step
    # Large inputs: biggest tile <= cap that still leaves >= 2 grid steps so the
    # "parallel" batch axis can be split across v7x's two TensorCores.
    return min(_MAX_ROW_TILE, _round_up(pl.cdiv(n_rows, 2), 8))


def ventas_nn_forward(x, w1, b1, w2, b2, *, use_bf16=False):
    """relu(x @ w1.T + b1) @ w2.T + b2 with PyTorch nn.Linear weight layouts.

    x: [B, input_dim]; w1: [hidden, input_dim]; b1: [hidden];
    w2: [output_dim, hidden]; b2: [output_dim].  Returns [B, output_dim].
    """
    batch, input_dim = x.shape
    hidden_dim = w1.shape[0]
    output_dim = w2.shape[0]
    out_dtype = x.dtype

    # Tiny batches: pallas_call fixed cost (~1-2 us) dwarfs ~0.3 Kflop/row of work.
    if batch <= _SMALL_BATCH:
        return (jnp.maximum(x @ w1.T + b1, 0.0) @ w2.T + b2).astype(out_dtype)

    # Pack spr samples per 128-lane row when input_dim divides 128; else spr = 1.
    spr = 128 // input_dim if (input_dim <= 128 and 128 % input_dim == 0) else 1
    k_in = spr * input_dim
    n_rows = pl.cdiv(batch, spr)
    row_tile = _pick_row_tile(n_rows)
    grid = (pl.cdiv(n_rows, row_tile),)
    n_rows_pad = grid[0] * row_tile
    batch_pad = n_rows_pad * spr

    xp = x if batch_pad == batch else jnp.pad(x, ((0, batch_pad - batch), (0, 0)))
    xp = xp.reshape(n_rows_pad, k_in)              # metadata-only for row-major f32

    # One-time expansion of the tiny weights (done by XLA in the wrapper).
    eye = jnp.eye(spr, dtype=w1.dtype)
    w1e = jnp.kron(eye, w1.T)                                            # [k_in, spr*H]
    b1e = jnp.tile(b1, spr).reshape(1, spr * hidden_dim)                 # [1, spr*H]
    w2e = jnp.kron(eye.astype(jnp.float32), w2.T.astype(jnp.float32))    # [spr*H, spr*out]
    b2e = jnp.tile(b2, spr).reshape(1, spr * output_dim).astype(jnp.float32)

    if use_bf16:
        # Halves the dominant x HBM stream and doubles MXU rate on v6e/v7x.
        # Accumulation stays f32 (preferred_element_type); bias adds, ReLU and the
        # trivial second matmul stay f32 (safe on v5e's f32-only VPU too).
        xp = xp.astype(jnp.bfloat16)
        w1e = w1e.astype(jnp.bfloat16)

    n_out = spr * output_dim
    cost = pl.CostEstimate(
        flops=2 * batch_pad * hidden_dim * (input_dim + output_dim),
        transcendentals=0,
        bytes_accessed=(xp.size * xp.dtype.itemsize
                        + w1e.size * w1e.dtype.itemsize
                        + 4 * (b1e.size + w2e.size + b2e.size + batch_pad * output_dim)),
    )

    out = pl.pallas_call(
        _mlp_kernel,
        out_shape=jax.ShapeDtypeStruct((n_rows_pad, n_out), out_dtype),
        grid=grid,
        in_specs=[
            pl.BlockSpec((row_tile, k_in), lambda i: (i, 0)),
            pl.BlockSpec((k_in, spr * hidden_dim), lambda i: (0, 0)),
            pl.BlockSpec((1, spr * hidden_dim), lambda i: (0, 0)),
            pl.BlockSpec((spr * hidden_dim, n_out), lambda i: (0, 0)),
            pl.BlockSpec((1, n_out), lambda i: (0, 0)),
        ],
        out_specs=pl.BlockSpec((row_tile, n_out), lambda i: (i, 0)),
        compiler_params=pltpu.CompilerParams(
            dimension_semantics=("parallel",),
            vmem_limit_bytes=_VMEM_LIMIT,
        ),
        cost_estimate=cost,
    )(xp, w1e, b1e, w2e, b2e)

    # [n_rows_pad, spr*out] -> [batch_pad, out] is metadata-only; drop the pad rows.
    return out.reshape(batch_pad, output_dim)[:batch]


if __name__ == "__main__":
    key = jax.random.PRNGKey(0)
    kx, kw1, kb1, kw2, kb2, kxb, kw2g, kb2g = jax.random.split(key, 8)

    # Shapes implied by the module: Linear(input_dim, hidden) -> ReLU -> Linear(hidden, out)
    input_dim, hidden_dim, output_dim = 4, 32, 1

    # PyTorch nn.Linear-style init, PyTorch weight layout [out_features, in_features].
    bound1 = 1.0 / (input_dim ** 0.5)
    w1 = jax.random.uniform(kw1, (hidden_dim, input_dim), jnp.float32, -bound1, bound1)
    b1 = jax.random.uniform(kb1, (hidden_dim,), jnp.float32, -bound1, bound1)
    bound2 = 1.0 / (hidden_dim ** 0.5)
    w2 = jax.random.uniform(kw2, (output_dim, hidden_dim), jnp.float32, -bound2, bound2)
    b2 = jax.random.uniform(kb2, (output_dim,), jnp.float32, -bound2, bound2)

    def ref_fwd(xa, w1a, b1a, w2a, b2a):
        return jnp.maximum(xa @ w1a.T + b1a, 0.0) @ w2a.T + b2a

    # 1) Tiny batch -> non-Pallas fast path (launch overhead would dominate).
    x_small = jax.random.normal(kx, (8, input_dim), dtype=jnp.float32)
    out_small = jax.block_until_ready(ventas_nn_forward(x_small, w1, b1, w2, b2))
    assert out_small.shape == (8, output_dim)
    assert jnp.allclose(out_small, ref_fwd(x_small, w1, b1, w2, b2), atol=1e-5, rtol=1e-5)

    # 2) Packed Pallas path, batch not a multiple of the packing (padding + single tile).
    x_mid = jax.random.normal(kxb, (4100, input_dim), dtype=jnp.float32)
    out_mid = jax.block_until_ready(ventas_nn_forward(x_mid, w1, b1, w2, b2))
    assert out_mid.shape == (4100, output_dim)
    assert jnp.allclose(out_mid, ref_fwd(x_mid, w1, b1, w2, b2), atol=1e-4, rtol=1e-4)

    # 3) Multi-step grid (2 tiles -> both v7x TensorCores) with a padded tail.
    x_big = jax.random.normal(kx, (40000, input_dim), dtype=jnp.float32)
    out_big = jax.block_until_ready(ventas_nn_forward(x_big, w1, b1, w2, b2))
    assert out_big.shape == (40000, output_dim)
    assert jnp.allclose(out_big, ref_fwd(x_big, w1, b1, w2, b2), atol=1e-4, rtol=1e-4)

    # 4) General head (output_dim = 3) through the same packed kernel.
    w2g = jax.random.uniform(kw2g, (3, hidden_dim), jnp.float32, -bound2, bound2)
    b2g = jax.random.uniform(kb2g, (3,), jnp.float32, -bound2, bound2)
    out_g = jax.block_until_ready(ventas_nn_forward(x_mid, w1, b1, w2g, b2g))
    assert out_g.shape == (4100, 3)
    assert jnp.allclose(out_g, ref_fwd(x_mid, w1, b1, w2g, b2g), atol=1e-4, rtol=1e-4)

    # 5) bf16 inputs (x, w1) with f32 accumulation; compare against an f32 reference
    #    evaluated on the same bf16-rounded inputs.
    out_bf = jax.block_until_ready(ventas_nn_forward(x_big, w1, b1, w2, b2, use_bf16=True))
    x_r = x_big.astype(jnp.bfloat16).astype(jnp.float32)
    w1_r = w1.astype(jnp.bfloat16).astype(jnp.float32)
    assert jnp.allclose(out_bf, ref_fwd(x_r, w1_r, b1, w2, b2), atol=1e-3, rtol=1e-3)

    print("KERNEL_OK")
</pallas_src>

<mosaic_0001>
module attributes {stable_mosaic.version = 11 : i64} {
  func.func @_mlp_kernel(%arg0: i32, %arg1: memref<136x128xf32, #tpu.memory_space<vmem>>, %arg2: memref<128x1024xf32, #tpu.memory_space<vmem>>, %arg3: memref<1x1024xf32, #tpu.memory_space<vmem>>, %arg4: memref<1024x32xf32, #tpu.memory_space<vmem>>, %arg5: memref<1x32xf32, #tpu.memory_space<vmem>>, %arg6: memref<136x32xf32, #tpu.memory_space<vmem>>) attributes {dimension_semantics = [#tpu.dimension_semantics<parallel>], iteration_bounds = array<i64: 1>, scalar_prefetch = 0 : i64, scratch_operands = 0 : i64, tpu.core_type = #tpu.core_type<tc>, window_params = [{transform_indices = @transform_0, window_bounds = array<i64: 136, 128>}, {pipeline_mode = #tpu.pipeline_mode<synchronous>, transform_indices = @transform_1, window_bounds = array<i64: 128, 1024>}, {pipeline_mode = #tpu.pipeline_mode<synchronous>, transform_indices = @transform_2, window_bounds = array<i64: 1, 1024>}, {pipeline_mode = #tpu.pipeline_mode<synchronous>, transform_indices = @transform_3, window_bounds = array<i64: 1024, 32>}, {pipeline_mode = #tpu.pipeline_mode<synchronous>, transform_indices = @transform_4, window_bounds = array<i64: 1, 32>}, {transform_indices = @transform_5, window_bounds = array<i64: 136, 32>}]} {
    %c0 = arith.constant 0 : index
    %c0_0 = arith.constant 0 : index
    %0 = vector.load %arg1[%c0, %c0_0] : memref<136x128xf32, #tpu.memory_space<vmem>>, vector<136x128xf32>
    %c0_1 = arith.constant 0 : index
    %c0_2 = arith.constant 0 : index
    %1 = vector.load %arg2[%c0_1, %c0_2] : memref<128x1024xf32, #tpu.memory_space<vmem>>, vector<128x1024xf32>
    %cst = arith.constant dense<0.000000e+00> : vector<136x1024xf32>
    %2 = tpu.matmul %0, %1, %cst {dimension_numbers = #tpu.dot_dimension_numbers<[1], [0], [0], [1], [0, 0, 1, 1], [], []>} : vector<136x128xf32>, vector<128x1024xf32>, vector<136x1024xf32> -> vector<136x1024xf32>
    %c0_3 = arith.constant 0 : index
    %c0_4 = arith.constant 0 : index
    %3 = vector.load %arg3[%c0_3, %c0_4] : memref<1x1024xf32, #tpu.memory_space<vmem>>, vector<1x1024xf32>
    %4 = vector.broadcast %3 : vector<1x1024xf32> to vector<136x1024xf32>
    %5 = arith.addf %2, %4 : vector<136x1024xf32>
    %cst_5 = arith.constant 0.000000e+00 : f32
    %6 = vector.broadcast %cst_5 : f32 to vector<136x1024xf32>
    %7 = arith.maximumf %5, %6 : vector<136x1024xf32>
    %c0_6 = arith.constant 0 : index
    %c0_7 = arith.constant 0 : index
    %8 = vector.load %arg4[%c0_6, %c0_7] : memref<1024x32xf32, #tpu.memory_space<vmem>>, vector<1024x32xf32>
    %cst_8 = arith.constant dense<0.000000e+00> : vector<136x32xf32>
    %9 = tpu.matmul %7, %8, %cst_8 {dimension_numbers = #tpu.dot_dimension_numbers<[1], [0], [0], [1], [0, 0, 1, 1], [], []>} : vector<136x1024xf32>, vector<1024x32xf32>, vector<136x32xf32> -> vector<136x32xf32>
    %c0_9 = arith.constant 0 : index
    %c0_10 = arith.constant 0 : index
    %10 = vector.load %arg5[%c0_9, %c0_10] : memref<1x32xf32, #tpu.memory_space<vmem>>, vector<1x32xf32>
    %11 = vector.broadcast %10 : vector<1x32xf32> to vector<136x32xf32>
    %12 = arith.addf %9, %11 : vector<136x32xf32>
    %c0_11 = arith.constant 0 : index
    %c0_12 = arith.constant 0 : index
    %13 = vector.load %arg6[%c0_11, %c0_12] : memref<136x32xf32, #tpu.memory_space<vmem>>, vector<136x32xf32>
    tpu.vector_store %arg6[%c0_11, %c0_12], %12 {strides = array<i32>} : memref<136x32xf32, #tpu.memory_space<vmem>>, vector<136x32xf32>,
    return
  }
  func.func @transform_0(%arg0: i32) -> (i32, i32) {
    %c0_i32 = arith.constant 0 : i32
    %c0_i32_0 = arith.constant 0 : i32
    return %arg0, %c0_i32 : i32, i32
  }
  func.func @transform_1(%arg0: i32) -> (i32, i32) {
    %c0_i32 = arith.constant 0 : i32
    %c0_i32_0 = arith.constant 0 : i32
    %c0_i32_1 = arith.constant 0 : i32
    return %c0_i32, %c0_i32_0 : i32, i32
  }
  func.func @transform_2(%arg0: i32) -> (i32, i32) {
    %c0_i32 = arith.constant 0 : i32
    %c0_i32_0 = arith.constant 0 : i32
    %c0_i32_1 = arith.constant 0 : i32
    return %c0_i32, %c0_i32_0 : i32, i32
  }
  func.func @transform_3(%arg0: i32) -> (i32, i32) {
    %c0_i32 = arith.constant 0 : i32
    %c0_i32_0 = arith.constant 0 : i32
    %c0_i32_1 = arith.constant 0 : i32
    return %c0_i32, %c0_i32_0 : i32, i32
  }
  func.func @transform_4(%arg0: i32) -> (i32, i32) {
    %c0_i32 = arith.constant 0 : i32
    %c0_i32_0 = arith.constant 0 : i32
    %c0_i32_1 = arith.constant 0 : i32
    return %c0_i32, %c0_i32_0 : i32, i32
  }
  func.func @transform_5(%arg0: i32) -> (i32, i32) {
    %c0_i32 = arith.constant 0 : i32
    %c0_i32_0 = arith.constant 0 : i32
    return %arg0, %c0_i32 : i32, i32
  }
}

</mosaic_0001>

<llo_original>
// kernel: tpu_custom_call.1
$region0: #{tpu_custom_call.1}
  #allocation0 [shape = 'u32[]', space=smem, size = 0x4, offset = 0x4, fixed_abs, tag = 'smem constant byte address 0x4 - core index']
  #allocation1 [shape = 'u32[144,128]{1,0:T(1,128)}', space=vmem, size = 0x12000, scoped, tag = 'internal scratch']
  %s0 = inlined_call_operand.vmem [shape: f32[136,128], index: 0, kind: input, shape index: {}]
  %s1 = inlined_call_operand.vmem [shape: f32[128,1024], index: 1, kind: input, shape index: {}]
  %s2 = inlined_call_operand.vmem [shape: f32[1,1024], index: 2, kind: input, shape index: {}]
  %s3 = inlined_call_operand.vmem [shape: f32[1024,32], index: 3, kind: input, shape index: {}]
  %s4 = inlined_call_operand.vmem [shape: f32[1,32], index: 4, kind: input, shape index: {}]
  %s5 = inlined_call_operand.vmem [shape: f32[136,32], index: 5, kind: output, shape index: {}]
  %s6 = sld [smem:[#allocation0]]
  $region30: #{tpu_custom_call.1} parent=0
    _
  %s8 = ssub.s32 1, %s6
  %s9 = scalar_select 0, %s8, %s6
  // Predicated region
  $region2: #{tpu_custom_call.1} parent=0 // pred_check
    _
  $region3: #{tpu_custom_call.1} parent=0 // pred_check_branch
    %11 = sbr.rel (0) target = $region5
  $region4: #{tpu_custom_call.1} parent=0 // pred_region
    _
  $region5: #{tpu_custom_call.1} parent=0 // pred_fallthru
    _
  // Predicated region
  $region6: #{tpu_custom_call.1} parent=0 // pred_check
    _
  $region7: #{tpu_custom_call.1} parent=0 // pred_check_branch
    %13 = sbr.rel (0) target = $region9
  $region8: #{tpu_custom_call.1} parent=0 // pred_region
    _
  $region9: #{tpu_custom_call.1} parent=0 // pred_fallthru
    _
  // Predicated region
  $region10: #{tpu_custom_call.1} parent=0 // pred_check
    _
  $region11: #{tpu_custom_call.1} parent=0 // pred_check_branch
    %15 = sbr.rel (0) target = $region13
  $region12: #{tpu_custom_call.1} parent=0 // pred_region
    _
  $region13: #{tpu_custom_call.1} parent=0 // pred_fallthru
    _
  // Predicated region
  $region14: #{tpu_custom_call.1} parent=0 // pred_check
    _
  $region15: #{tpu_custom_call.1} parent=0 // pred_check_branch
    %17 = sbr.rel (0) target = $region17
  $region16: #{tpu_custom_call.1} parent=0 // pred_region
    _
  $region17: #{tpu_custom_call.1} parent=0 // pred_fallthru
    _
  // Predicated region
  $region18: #{tpu_custom_call.1} parent=0 // pred_check
    _
  $region19: #{tpu_custom_call.1} parent=0 // pred_check_branch
    %19 = sbr.rel (0) target = $region21
  $region20: #{tpu_custom_call.1} parent=0 // pred_region
    _
  $region21: #{tpu_custom_call.1} parent=0 // pred_fallthru
    _
  %v20 = vld [vmem:[%s0] sm:$0xff]
  %v21 = vld [vmem:[%s0 + $0x8] sm:$0xff]
  %v22 = vld [vmem:[%s0 + $0x10] sm:$0xff]
  %v23 = vld [vmem:[%s0 + $0x18] sm:$0xff]
  %v24 = vld [vmem:[%s0 + $0x20] sm:$0xff]
  %v25 = vld [vmem:[%s0 + $0x28] sm:$0xff]
  %v26 = vld [vmem:[%s0 + $0x30] sm:$0xff]
  %v27 = vld [vmem:[%s0 + $0x38] sm:$0xff]
  %v28 = vld [vmem:[%s0 + $0x40] sm:$0xff]
  %v29 = vld [vmem:[%s0 + $0x48] sm:$0xff]
  %v30 = vld [vmem:[%s0 + $0x50] sm:$0xff]
  %v31 = vld [vmem:[%s0 + $0x58] sm:$0xff]
  %v32 = vld [vmem:[%s0 + $0x60] sm:$0xff]
  %v33 = vld [vmem:[%s0 + $0x68] sm:$0xff]
  %v34 = vld [vmem:[%s0 + $0x70] sm:$0xff]
  %v35 = vld [vmem:[%s0 + $0x78] sm:$0xff]
  %v36 = vld [vmem:[%s0 + $0x80] sm:$0xff]
  %v37 = vld [vmem:[%s1] sm:$0xff]
  %v38 = vld [vmem:[%s1 + $0x8] sm:$0xff]
  %v39 = vld [vmem:[%s1 + $0x10] sm:$0xff]
  %v40 = vld [vmem:[%s1 + $0x18] sm:$0xff]
  %v41 = vld [vmem:[%s1 + $0x20] sm:$0xff]
  %v42 = vld [vmem:[%s1 + $0x28] sm:$0xff]
  %v43 = vld [vmem:[%s1 + $0x30] sm:$0xff]
  %v44 = vld [vmem:[%s1 + $0x38] sm:$0xff]
  %v45 = vld [vmem:[%s1 + $0x40] sm:$0xff]
  %v46 = vld [vmem:[%s1 + $0x48] sm:$0xff]
  %v47 = vld [vmem:[%s1 + $0x50] sm:$0xff]
  %v48 = vld [vmem:[%s1 + $0x58] sm:$0xff]
  %v49 = vld [vmem:[%s1 + $0x60] sm:$0xff]
  %v50 = vld [vmem:[%s1 + $0x68] sm:$0xff]
  %v51 = vld [vmem:[%s1 + $0x70] sm:$0xff]
  %v52 = vld [vmem:[%s1 + $0x78] sm:$0xff]
  %v53 = vld [vmem:[%s1 + $0x80] sm:$0xff]
  %v54 = vld [vmem:[%s1 + $0x88] sm:$0xff]
  %v55 = vld [vmem:[%s1 + $0x90] sm:$0xff]
  %v56 = vld [vmem:[%s1 + $0x98] sm:$0xff]
  %v57 = vld [vmem:[%s1 + $0xa0] sm:$0xff]
  %v58 = vld [vmem:[%s1 + $0xa8] sm:$0xff]
  %v59 = vld [vmem:[%s1 + $0xb0] sm:$0xff]
  %v60 = vld [vmem:[%s1 + $0xb8] sm:$0xff]
  %v61 = vld [vmem:[%s1 + $0xc0] sm:$0xff]
  %v62 = vld [vmem:[%s1 + $0xc8] sm:$0xff]
  %v63 = vld [vmem:[%s1 + $0xd0] sm:$0xff]
  %v64 = vld [vmem:[%s1 + $0xd8] sm:$0xff]
  %v65 = vld [vmem:[%s1 + $0xe0] sm:$0xff]
  %v66 = vld [vmem:[%s1 + $0xe8] sm:$0xff]
  %v67 = vld [vmem:[%s1 + $0xf0] sm:$0xff]
  %v68 = vld [vmem:[%s1 + $0xf8] sm:$0xff]
  %v69 = vld [vmem:[%s1 + $0x100] sm:$0xff]
  %v70 = vld [vmem:[%s1 + $0x108] sm:$0xff]
  %v71 = vld [vmem:[%s1 + $0x110] sm:$0xff]
  %v72 = vld [vmem:[%s1 + $0x118] sm:$0xff]
  %v73 = vld [vmem:[%s1 + $0x120] sm:$0xff]
  %v74 = vld [vmem:[%s1 + $0x128] sm:$0xff]
  %v75 = vld [vmem:[%s1 + $0x130] sm:$0xff]
  %v76 = vld [vmem:[%s1 + $0x138] sm:$0xff]
  %v77 = vld [vmem:[%s1 + $0x140] sm:$0xff]
  %v78 = vld [vmem:[%s1 + $0x148] sm:$0xff]
  %v79 = vld [vmem:[%s1 + $0x150] sm:$0xff]
  %v80 = vld [vmem:[%s1 + $0x158] sm:$0xff]
  %v81 = vld [vmem:[%s1 + $0x160] sm:$0xff]
  %v82 = vld [vmem:[%s1 + $0x168] sm:$0xff]
  %v83 = vld [vmem:[%s1 + $0x170] sm:$0xff]
  %v84 = vld [vmem:[%s1 + $0x178] sm:$0xff]
  %v85 = vld [vmem:[%s1 + $0x180] sm:$0xff]
  %v86 = vld [vmem:[%s1 + $0x188] sm:$0xff]
  %v87 = vld [vmem:[%s1 + $0x190] sm:$0xff]
  %v88 = vld [vmem:[%s1 + $0x198] sm:$0xff]
  %v89 = vld [vmem:[%s1 + $0x1a0] sm:$0xff]
  %v90 = vld [vmem:[%s1 + $0x1a8] sm:$0xff]
  %v91 = vld [vmem:[%s1 + $0x1b0] sm:$0xff]
  %v92 = vld [vmem:[%s1 + $0x1b8] sm:$0xff]
  %v93 = vld [vmem:[%s1 + $0x1c0] sm:$0xff]
  %v94 = vld [vmem:[%s1 + $0x1c8] sm:$0xff]
  %v95 = vld [vmem:[%s1 + $0x1d0] sm:$0xff]
  %v96 = vld [vmem:[%s1 + $0x1d8] sm:$0xff]
  %v97 = vld [vmem:[%s1 + $0x1e0] sm:$0xff]
  %v98 = vld [vmem:[%s1 + $0x1e8] sm:$0xff]
  %v99 = vld [vmem:[%s1 + $0x1f0] sm:$0xff]
  %v100 = vld [vmem:[%s1 + $0x1f8] sm:$0xff]
  %v101 = vld [vmem:[%s1 + $0x200] sm:$0xff]
  %v102 = vld [vmem:[%s1 + $0x208] sm:$0xff]
  %v103 = vld [vmem:[%s1 + $0x210] sm:$0xff]
  %v104 = vld [vmem:[%s1 + $0x218] sm:$0xff]
  %v105 = vld [vmem:[%s1 + $0x220] sm:$0xff]
  %v106 = vld [vmem:[%s1 + $0x228] sm:$0xff]
  %v107 = vld [vmem:[%s1 + $0x230] sm:$0xff]
  %v108 = vld [vmem:[%s1 + $0x238] sm:$0xff]
  %v109 = vld [vmem:[%s1 + $0x240] sm:$0xff]
  %v110 = vld [vmem:[%s1 + $0x248] sm:$0xff]
  %v111 = vld [vmem:[%s1 + $0x250] sm:$0xff]
  %v112 = vld [vmem:[%s1 + $0x258] sm:$0xff]
  %v113 = vld [vmem:[%s1 + $0x260] sm:$0xff]
  %v114 = vld [vmem:[%s1 + $0x268] sm:$0xff]
  %v115 = vld [vmem:[%s1 + $0x270] sm:$0xff]
  %v116 = vld [vmem:[%s1 + $0x278] sm:$0xff]
  %v117 = vld [vmem:[%s1 + $0x280] sm:$0xff]
  %v118 = vld [vmem:[%s1 + $0x288] sm:$0xff]
  %v119 = vld [vmem:[%s1 + $0x290] sm:$0xff]
  %v120 = vld [vmem:[%s1 + $0x298] sm:$0xff]
  %v121 = vld [vmem:[%s1 + $0x2a0] sm:$0xff]
  %v122 = vld [vmem:[%s1 + $0x2a8] sm:$0xff]
  %v123 = vld [vmem:[%s1 + $0x2b0] sm:$0xff]
  %v124 = vld [vmem:[%s1 + $0x2b8] sm:$0xff]
  %v125 = vld [vmem:[%s1 + $0x2c0] sm:$0xff]
  %v126 = vld [vmem:[%s1 + $0x2c8] sm:$0xff]
  %v127 = vld [vmem:[%s1 + $0x2d0] sm:$0xff]
  %v128 = vld [vmem:[%s1 + $0x2d8] sm:$0xff]
  %v129 = vld [vmem:[%s1 + $0x2e0] sm:$0xff]
  %v130 = vld [vmem:[%s1 + $0x2e8] sm:$0xff]
  %v131 = vld [vmem:[%s1 + $0x2f0] sm:$0xff]
  %v132 = vld [vmem:[%s1 + $0x2f8] sm:$0xff]
  %v133 = vld [vmem:[%s1 + $0x300] sm:$0xff]
  %v134 = vld [vmem:[%s1 + $0x308] sm:$0xff]
  %v135 = vld [vmem:[%s1 + $0x310] sm:$0xff]
  %v136 = vld [vmem:[%s1 + $0x318] sm:$0xff]
  %v137 = vld [vmem:[%s1 + $0x320] sm:$0xff]
  %v138 = vld [vmem:[%s1 + $0x328] sm:$0xff]
  %v139 = vld [vmem:[%s1 + $0x330] sm:$0xff]
  %v140 = vld [vmem:[%s1 + $0x338] sm:$0xff]
  %v141 = vld [vmem:[%s1 + $0x340] sm:$0xff]
  %v142 = vld [vmem:[%s1 + $0x348] sm:$0xff]
  %v143 = vld [vmem:[%s1 + $0x350] sm:$0xff]
  %v144 = vld [vmem:[%s1 + $0x358] sm:$0xff]
  %v145 = vld [vmem:[%s1 + $0x360] sm:$0xff]
  %v146 = vld [vmem:[%s1 + $0x368] sm:$0xff]
  %v147 = vld [vmem:[%s1 + $0x370] sm:$0xff]
  %v148 = vld [vmem:[%s1 + $0x378] sm:$0xff]
  %v149 = vld [vmem:[%s1 + $0x380] sm:$0xff]
  %v150 = vld [vmem:[%s1 + $0x388] sm:$0xff]
  %v151 = vld [vmem:[%s1 + $0x390] sm:$0xff]
  %v152 = vld [vmem:[%s1 + $0x398] sm:$0xff]
  %v153 = vld [vmem:[%s1 + $0x3a0] sm:$0xff]
  %v154 = vld [vmem:[%s1 + $0x3a8] sm:$0xff]
  %v155 = vld [vmem:[%s1 + $0x3b0] sm:$0xff]
  %v156 = vld [vmem:[%s1 + $0x3b8] sm:$0xff]
  %v157 = vld [vmem:[%s1 + $0x3c0] sm:$0xff]
  %v158 = vld [vmem:[%s1 + $0x3c8] sm:$0xff]
  %v159 = vld [vmem:[%s1 + $0x3d0] sm:$0xff]
  %v160 = vld [vmem:[%s1 + $0x3d8] sm:$0xff]
  %v161 = vld [vmem:[%s1 + $0x3e0] sm:$0xff]
  %v162 = vld [vmem:[%s1 + $0x3e8] sm:$0xff]
  %v163 = vld [vmem:[%s1 + $0x3f0] sm:$0xff]
  %v164 = vld [vmem:[%s1 + $0x3f8] sm:$0xff]
  %v165 = vld [vmem:[%s2] sm:$0xff]
  %v167 = vlaneseq
  %v168 = vshrl.u32 %v167, 7
  %v169 = vsub.s32 0, %v168
  %v170 = vrot.slane %v165, %v169
  %v171 = vlaneseq
  %v172 = vshrl.u32 %v171, 7
  %v173 = vsub.s32 1, %v172
  %v174 = vrot.slane %v165, %v173
  %v175 = vlaneseq
  %v176 = vshrl.u32 %v175, 7
  %v177 = vsub.s32 2, %v176
  %v178 = vrot.slane %v165, %v177
  %v179 = vlaneseq
  %v180 = vshrl.u32 %v179, 7
  %v181 = vsub.s32 3, %v180
  %v182 = vrot.slane %v165, %v181
  %v183 = vlaneseq
  %v184 = vshrl.u32 %v183, 7
  %v185 = vsub.s32 4, %v184
  %v186 = vrot.slane %v165, %v185
  %v187 = vlaneseq
  %v188 = vshrl.u32 %v187, 7
  %v189 = vsub.s32 5, %v188
  %v190 = vrot.slane %v165, %v189
  %v191 = vlaneseq
  %v192 = vshrl.u32 %v191, 7
  %v193 = vsub.s32 6, %v192
  %v194 = vrot.slane %v165, %v193
  %v195 = vlaneseq
  %v196 = vshrl.u32 %v195, 7
  %v197 = vsub.s32 7, %v196
  %v198 = vrot.slane %v165, %v197
  %207 = vmatprep.subr.mxu0 %v38
  %208 = vmatpush1.msra.mxu0 %v37
  %209 = vmatprep.subr.mxu0 %v46
  %210 = vmatpush1.msra.mxu0 %v45
  %211 = vmatprep.subr.mxu0 %v54
  %212 = vmatpush1.msra.mxu0 %v53
  %213 = vmatprep.subr.mxu0 %v62
  %214 = vmatpush1.msra.mxu0 %v61
  %215 = vmatprep.subr.mxu0 %v70
  %216 = vmatpush1.msra.mxu0 %v69
  %217 = vmatprep.subr.mxu0 %v78
  %218 = vmatpush1.msra.mxu0 %v77
  %219 = vmatprep.subr.mxu0 %v86
  %220 = vmatpush1.msra.mxu0 %v85
  %221 = vmatprep.subr.mxu0 %v94
  %222 = vmatpush1.msra.mxu0 %v93
  %223 = vmatprep.subr.mxu0 %v102
  %224 = vmatpush1.msra.mxu0 %v101
  %225 = vmatprep.subr.mxu0 %v110
  %226 = vmatpush1.msra.mxu0 %v109
  %227 = vmatprep.subr.mxu0 %v118
  %228 = vmatpush1.msra.mxu0 %v117
  %229 = vmatprep.subr.mxu0 %v126
  %230 = vmatpush1.msra.mxu0 %v125
  %231 = vmatprep.subr.mxu0 %v134
  %232 = vmatpush1.msra.mxu0 %v133
  %233 = vmatprep.subr.mxu0 %v142
  %234 = vmatpush1.msra.mxu0 %v141
  %235 = vmatprep.subr.mxu0 %v150
  %236 = vmatpush1.msra.mxu0 %v149
  %237 = vmatprep.subr.mxu0 %v158
  %238 = vmatpush1.msra.mxu0 %v157
  %239 = vmatprep.subr.mxu0 0.0
  %240 = vmatpush1.msra.mxu0 0.0
  %241 = vmatprep.subr.mxu0 0.0
  %242 = vmatpush1.msra.mxu0 0.0
  %243 = vmatprep.subr.mxu0 0.0
  %244 = vmatpush1.msra.mxu0 0.0
  %245 = vmatprep.subr.mxu0 0.0
  %246 = vmatpush1.msra.mxu0 0.0
  %247 = vmatprep.subr.mxu0 0.0
  %248 = vmatpush1.msra.mxu0 0.0
  %249 = vmatprep.subr.mxu0 0.0
  %250 = vmatpush1.msra.mxu0 0.0
  %251 = vmatprep.subr.mxu0 0.0
  %252 = vmatpush1.msra.mxu0 0.0
  %253 = vmatprep.subr.mxu0 0.0
  %254 = vmatpush1.msra.mxu0 0.0
  %255 = vmatprep.subr.mxu0 0.0
  %256 = vmatpush1.msra.mxu0 0.0
  %257 = vmatprep.subr.mxu0 0.0
  %258 = vmatpush1.msra.mxu0 0.0
  %259 = vmatprep.subr.mxu0 0.0
  %260 = vmatpush1.msra.mxu0 0.0
  %261 = vmatprep.subr.mxu0 0.0
  %262 = vmatpush1.msra.mxu0 0.0
  %263 = vmatprep.subr.mxu0 0.0
  %264 = vmatpush1.msra.mxu0 0.0
  %265 = vmatprep.subr.mxu0 0.0
  %266 = vmatpush1.msra.mxu0 0.0
  %267 = vmatprep.subr.mxu0 0.0
  %268 = vmatpush1.msra.mxu0 0.0
  %269 = vmatprep.subr.mxu0 0.0
  %270 = vmatpush1.msra.mxu0 0.0
  %271 = vmatprep.mubr.f32.mxu0 0.0
  %272 = vmatmul.mubr.f32.gmra.mrb[0].mxu0 %v20
  %v273 = vpop.f32.mrb[0].mxu0
  %v274 = vadd.f32 %v170, %v273
  %v275 = vpop.f32.mrb[0].mxu0
  %v276 = vadd.f32 %v174, %v275
  %277 = vmatprep.mubr.f32.mxu0 0.0
  %278 = vmatmul.mubr.f32.gmra.mrb[0].mxu0 %v21
  %v279 = vpop.f32.mrb[0].mxu0
  %v280 = vadd.f32 %v170, %v279
  %v281 = vpop.f32.mrb[0].mxu0
  %v282 = vadd.f32 %v174, %v281
  %283 = vmatprep.mubr.f32.mxu0 0.0
  %284 = vmatmul.mubr.f32.gmra.mrb[0].mxu0 %v22
  %v285 = vpop.f32.mrb[0].mxu0
  %v286 = vadd.f32 %v170, %v285
  %v287 = vpop.f32.mrb[0].mxu0
  %v288 = vadd.f32 %v174, %v287
  %289 = vmatprep.mubr.f32.mxu0 0.0
  %290 = vmatmul.mubr.f32.gmra.mrb[0].mxu0 %v23
  %v291 = vpop.f32.mrb[0].mxu0
  %v292 = vadd.f32 %v170, %v291
  %v293 = vpop.f32.mrb[0].mxu0
  %v294 = vadd.f32 %v174, %v293
  %295 = vmatprep.mubr.f32.mxu0 0.0
  %296 = vmatmul.mubr.f32.gmra.mrb[0].mxu0 %v24
  %v297 = vpop.f32.mrb[0].mxu0
  %v298 = vadd.f32 %v170, %v297
  %v299 = vpop.f32.mrb[0].mxu0
  %v300 = vadd.f32 %v174, %v299
  %301 = vmatprep.mubr.f32.mxu0 0.0
  %302 = vmatmul.mubr.f32.gmra.mrb[0].mxu0 %v25
  %v303 = vpop.f32.mrb[0].mxu0
  %v304 = vadd.f32 %v170, %v303
  %v305 = vpop.f32.mrb[0].mxu0
  %v306 = vadd.f32 %v174, %v305
  %307 = vmatprep.mubr.f32.mxu0 0.0
  %308 = vmatmul.mubr.f32.gmra.mrb[0].mxu0 %v26
  %v309 = vpop.f32.mrb[0].mxu0
  %v310 = vadd.f32 %v170, %v309
  %v311 = vpop.f32.mrb[0].mxu0
  %v312 = vadd.f32 %v174, %v311
  %313 = vmatprep.mubr.f32.mxu0 0.0
  %314 = vmatmul.mubr.f32.gmra.mrb[0].mxu0 %v27
  %v315 = vpop.f32.mrb[0].mxu0
  %v316 = vadd.f32 %v170, %v315
  %v317 = vpop.f32.mrb[0].mxu0
  %v318 = vadd.f32 %v174, %v317
  %319 = vmatprep.mubr.f32.mxu0 0.0
  %320 = vmatmul.mubr.f32.gmra.mrb[0].mxu0 %v28
  %v321 = vpop.f32.mrb[0].mxu0
  %v322 = vadd.f32 %v170, %v321
  %v323 = vpop.f32.mrb[0].mxu0
  %v324 = vadd.f32 %v174, %v323
  %325 = vmatprep.mubr.f32.mxu0 0.0
  %326 = vmatmul.mubr.f32.gmra.mrb[0].mxu0 %v29
  %v327 = vpop.f32.mrb[0].mxu0
  %v328 = vadd.f32 %v170, %v327
  %v329 = vpop.f32.mrb[0].mxu0
  %v330 = vadd.f32 %v174, %v329
  %331 = vmatprep.mubr.f32.mxu0 0.0
  %332 = vmatmul.mubr.f32.gmra.mrb[0].mxu0 %v30
  %v333 = vpop.f32.mrb[0].mxu0
  %v334 = vadd.f32 %v170, %v333
  %v335 = vpop.f32.mrb[0].mxu0
  %v336 = vadd.f32 %v174, %v335
  %337 = vmatprep.mubr.f32.mxu0 0.0
  %338 = vmatmul.mubr.f32.gmra.mrb[0].mxu0 %v31
  %v339 = vpop.f32.mrb[0].mxu0
  %v340 = vadd.f32 %v170, %v339
  %v341 = vpop.f32.mrb[0].mxu0
  %v342 = vadd.f32 %v174, %v341
  %343 = vmatprep.mubr.f32.mxu0 0.0
  %344 = vmatmul.mubr.f32.gmra.mrb[0].mxu0 %v32
  %v345 = vpop.f32.mrb[0].mxu0
  %v346 = vadd.f32 %v170, %v345
  %v347 = vpop.f32.mrb[0].mxu0
  %v348 = vadd.f32 %v174, %v347
  %349 = vmatprep.mubr.f32.mxu0 0.0
  %350 = vmatmul.mubr.f32.gmra.mrb[0].mxu0 %v33
  %v351 = vpop.f32.mrb[0].mxu0
  %v352 = vadd.f32 %v170, %v351
  %v353 = vpop.f32.mrb[0].mxu0
  %v354 = vadd.f32 %v174, %v353
  %355 = vmatprep.mubr.f32.mxu0 0.0
  %356 = vmatmul.mubr.f32.gmra.mrb[0].mxu0 %v34
  %v357 = vpop.f32.mrb[0].mxu0
  %v358 = vadd.f32 %v170, %v357
  %v359 = vpop.f32.mrb[0].mxu0
  %v360 = vadd.f32 %v174, %v359
  %361 = vmatprep.mubr.f32.mxu0 0.0
  %362 = vmatmul.mubr.f32.gmra.mrb[0].mxu0 %v35
  %v363 = vpop.f32.mrb[0].mxu0
  %v364 = vadd.f32 %v170, %v363
  %v365 = vpop.f32.mrb[0].mxu0
  %v366 = vadd.f32 %v174, %v365
  %367 = vmatprep.mubr.f32.mxu0 0.0
  %368 = vmatmul.mubr.f32.gmra.mrb[0].mxu0 %v36
  %v369 = vpop.f32.mrb[0].mxu0
  %v370 = vadd.f32 %v170, %v369
  %v371 = vpop.f32.mrb[0].mxu0
  %v372 = vadd.f32 %v174, %v371
  %373 = vdwg.mxu0
  %374 = vmatprep.subr.mxu0 %v40
  %375 = vmatpush1.msra.mxu0 %v39
  %376 = vmatprep.subr.mxu0 %v48
  %377 = vmatpush1.msra.mxu0 %v47
  %378 = vmatprep.subr.mxu0 %v56
  %379 = vmatpush1.msra.mxu0 %v55
  %380 = vmatprep.subr.mxu0 %v64
  %381 = vmatpush1.msra.mxu0 %v63
  %382 = vmatprep.subr.mxu0 %v72
  %383 = vmatpush1.msra.mxu0 %v71
  %384 = vmatprep.subr.mxu0 %v80
  %385 = vmatpush1.msra.mxu0 %v79
  %386 = vmatprep.subr.mxu0 %v88
  %387 = vmatpush1.msra.mxu0 %v87
  %388 = vmatprep.subr.mxu0 %v96
  %389 = vmatpush1.msra.mxu0 %v95
  %390 = vmatprep.subr.mxu0 %v104
  %391 = vmatpush1.msra.mxu0 %v103
  %392 = vmatprep.subr.mxu0 %v112
  %393 = vmatpush1.msra.mxu0 %v111
  %394 = vmatprep.subr.mxu0 %v120
  %395 = vmatpush1.msra.mxu0 %v119
  %396 = vmatprep.subr.mxu0 %v128
  %397 = vmatpush1.msra.mxu0 %v127
  %398 = vmatprep.subr.mxu0 %v136
  %399 = vmatpush1.msra.mxu0 %v135
  %400 = vmatprep.subr.mxu0 %v144
  %401 = vmatpush1.msra.mxu0 %v143
  %402 = vmatprep.subr.mxu0 %v152
  %403 = vmatpush1.msra.mxu0 %v151
  %404 = vmatprep.subr.mxu0 %v160
  %405 = vmatpush1.msra.mxu0 %v159
  %406 = vmatprep.subr.mxu0 0.0
  %407 = vmatpush1.msra.mxu0 0.0
  %408 = vmatprep.subr.mxu0 0.0
  %409 = vmatpush1.msra.mxu0 0.0
  %410 = vmatprep.subr.mxu0 0.0
  %411 = vmatpush1.msra.mxu0 0.0
  %412 = vmatprep.subr.mxu0 0.0
  %413 = vmatpush1.msra.mxu0 0.0
  %414 = vmatprep.subr.mxu0 0.0
  %415 = vmatpush1.msra.mxu0 0.0
  %416 = vmatprep.subr.mxu0 0.0
  %417 = vmatpush1.msra.mxu0 0.0
  %418 = vmatprep.subr.mxu0 0.0
  %419 = vmatpush1.msra.mxu0 0.0
  %420 = vmatprep.subr.mxu0 0.0
  %421 = vmatpush1.msra.mxu0 0.0
  %422 = vmatprep.subr.mxu0 0.0
  %423 = vmatpush1.msra.mxu0 0.0
  %424 = vmatprep.subr.mxu0 0.0
  %425 = vmatpush1.msra.mxu0 0.0
  %426 = vmatprep.subr.mxu0 0.0
  %427 = vmatpush1.msra.mxu0 0.0
  %428 = vmatprep.subr.mxu0 0.0
  %429 = vmatpush1.msra.mxu0 0.0
  %430 = vmatprep.subr.mxu0 0.0
  %431 = vmatpush1.msra.mxu0 0.0
  %432 = vmatprep.subr.mxu0 0.0
  %433 = vmatpush1.msra.mxu0 0.0
  %434 = vmatprep.subr.mxu0 0.0
  %435 = vmatpush1.msra.mxu0 0.0
  %436 = vmatprep.subr.mxu0 0.0
  %437 = vmatpush1.msra.mxu0 0.0
  %438 = vmatprep.mubr.f32.mxu0 0.0
  %439 = vmatmul.mubr.f32.gmra.mrb[0].mxu0 %v20
  %v440 = vpop.f32.mrb[0].mxu0
  %v441 = vadd.f32 %v178, %v440
  %v442 = vpop.f32.mrb[0].mxu0
  %v443 = vadd.f32 %v182, %v442
  %444 = vmatprep.mubr.f32.mxu0 0.0
  %445 = vmatmul.mubr.f32.gmra.mrb[0].mxu0 %v21
  %v446 = vpop.f32.mrb[0].mxu0
  %v447 = vadd.f32 %v178, %v446
  %v448 = vpop.f32.mrb[0].mxu0
  %v449 = vadd.f32 %v182, %v448
  %450 = vmatprep.mubr.f32.mxu0 0.0
  %451 = vmatmul.mubr.f32.gmra.mrb[0].mxu0 %v22
  %v452 = vpop.f32.mrb[0].mxu0
  %v453 = vadd.f32 %v178, %v452
  %v454 = vpop.f32.mrb[0].mxu0
  %v455 = vadd.f32 %v182, %v454
  %456 = vmatprep.mubr.f32.mxu0 0.0
  %457 = vmatmul.mubr.f32.gmra.mrb[0].mxu0 %v23
  %v458 = vpop.f32.mrb[0].mxu0
  %v459 = vadd.f32 %v178, %v458
  %v460 = vpop.f32.mrb[0].mxu0
  %v461 = vadd.f32 %v182, %v460
  %462 = vmatprep.mubr.f32.mxu0 0.0
  %463 = vmatmul.mubr.f32.gmra.mrb[0].mxu0 %v24
  %v464 = vpop.f32.mrb[0].mxu0
  %v465 = vadd.f32 %v178, %v464
  %v466 = vpop.f32.mrb[0].mxu0
  %v467 = vadd.f32 %v182, %v466
  %468 = vmatprep.mubr.f32.mxu0 0.0
  %469 = vmatmul.mubr.f32.gmra.mrb[0].mxu0 %v25
  %v470 = vpop.f32.mrb[0].mxu0
  %v471 = vadd.f32 %v178, %v470
  %v472 = vpop.f32.mrb[0].mxu0
  %v473 = vadd.f32 %v182, %v472
  %474 = vmatprep.mubr.f32.mxu0 0.0
  %475 = vmatmul.mubr.f32.gmra.mrb[0].mxu0 %v26
  %v476 = vpop.f32.mrb[0].mxu0
  %v477 = vadd.f32 %v178, %v476
  %v478 = vpop.f32.mrb[0].mxu0
  %v479 = vadd.f32 %v182, %v478
  %480 = vmatprep.mubr.f32.mxu0 0.0
  %481 = vmatmul.mubr.f32.gmra.mrb[0].mxu0 %v27
  %v482 = vpop.f32.mrb[0].mxu0
  %v483 = vadd.f32 %v178, %v482
  %v484 = vpop.f32.mrb[0].mxu0
  %v485 = vadd.f32 %v182, %v484
  %486 = vmatprep.mubr.f32.mxu0 0.0
  %487 = vmatmul.mubr.f32.gmra.mrb[0].mxu0 %v28
  %v488 = vpop.f32.mrb[0].mxu0
  %v489 = vadd.f32 %v178, %v488
  %v490 = vpop.f32.mrb[0].mxu0
  %v491 = vadd.f32 %v182, %v490
  %492 = vmatprep.mubr.f32.mxu0 0.0
  %493 = vmatmul.mubr.f32.gmra.mrb[0].mxu0 %v29
  %v494 = vpop.f32.mrb[0].mxu0
  %v495 = vadd.f32 %v178, %v494
  %v496 = vpop.f32.mrb[0].mxu0
  %v497 = vadd.f32 %v182, %v496
  %498 = vmatprep.mubr.f32.mxu0 0.0
  %499 = vmatmul.mubr.f32.gmra.mrb[0].mxu0 %v30
  %v500 = vpop.f32.mrb[0].mxu0
  %v501 = vadd.f32 %v178, %v500
  %v502 = vpop.f32.mrb[0].mxu0
  %v503 = vadd.f32 %v182, %v502
  %504 = vmatprep.mubr.f32.mxu0 0.0
  %505 = vmatmul.mubr.f32.gmra.mrb[0].mxu0 %v31
  %v506 = vpop.f32.mrb[0].mxu0
  %v507 = vadd.f32 %v178, %v506
  %v508 = vpop.f32.mrb[0].mxu0
  %v509 = vadd.f32 %v182, %v508
  %510 = vmatprep.mubr.f32.mxu0 0.0
  %511 = vmatmul.mubr.f32.gmra.mrb[0].mxu0 %v32
  %v512 = vpop.f32.mrb[0].mxu0
  %v513 = vadd.f32 %v178, %v512
  %v514 = vpop.f32.mrb[0].mxu0
  %v515 = vadd.f32 %v182, %v514
  %516 = vmatprep.mubr.f32.mxu0 0.0
  %517 = vmatmul.mubr.f32.gmra.mrb[0].mxu0 %v33
  %v518 = vpop.f32.mrb[0].mxu0
  %v519 = vadd.f32 %v178, %v518
  %v520 = vpop.f32.mrb[0].mxu0
  %v521 = vadd.f32 %v182, %v520
  %522 = vmatprep.mubr.f32.mxu0 0.0
  %523 = vmatmul.mubr.f32.gmra.mrb[0].mxu0 %v34
  %v524 = vpop.f32.mrb[0].mxu0
  %v525 = vadd.f32 %v178, %v524
  %v526 = vpop.f32.mrb[0].mxu0
  %v527 = vadd.f32 %v182, %v526
  %528 = vmatprep.mubr.f32.mxu0 0.0
  %529 = vmatmul.mubr.f32.gmra.mrb[0].mxu0 %v35
  %v530 = vpop.f32.mrb[0].mxu0
  %v531 = vadd.f32 %v178, %v530
  %v532 = vpop.f32.mrb[0].mxu0
  %v533 = vadd.f32 %v182, %v532
  %534 = vmatprep.mubr.f32.mxu0 0.0
  %535 = vmatmul.mubr.f32.gmra.mrb[0].mxu0 %v36
  %v536 = vpop.f32.mrb[0].mxu0
  %v537 = vadd.f32 %v178, %v536
  %v538 = vpop.f32.mrb[0].mxu0
  %v539 = vadd.f32 %v182, %v538
  %540 = vdwg.mxu0
  %541 = vmatprep.subr.mxu0 %v42
  %542 = vmatpush1.msra.mxu0 %v41
  %543 = vmatprep.subr.mxu0 %v50
  %544 = vmatpush1.msra.mxu0 %v49
  %545 = vmatprep.subr.mxu0 %v58
  %546 = vmatpush1.msra.mxu0 %v57
  %547 = vmatprep.subr.mxu0 %v66
  %548 = vmatpush1.msra.mxu0 %v65
  %549 = vmatprep.subr.mxu0 %v74
  %550 = vmatpush1.msra.mxu0 %v73
  %551 = vmatprep.subr.mxu0 %v82
  %552 = vmatpush1.msra.mxu0 %v81
  %553 = vmatprep.subr.mxu0 %v90
  %554 = vmatpush1.msra.mxu0 %v89
  %555 = vmatprep.subr.mxu0 %v98
  %556 = vmatpush1.msra.mxu0 %v97
  %557 = vmatprep.subr.mxu0 %v106
  %558 = vmatpush1.msra.mxu0 %v105
  %559 = vmatprep.subr.mxu0 %v114
  %560 = vmatpush1.msra.mxu0 %v113
  %561 = vmatprep.subr.mxu0 %v122
  %562 = vmatpush1.msra.mxu0 %v121
  %563 = vmatprep.subr.mxu0 %v130
  %564 = vmatpush1.msra.mxu0 %v129
  %565 = vmatprep.subr.mxu0 %v138
  %566 = vmatpush1.msra.mxu0 %v137
  %567 = vmatprep.subr.mxu0 %v146
  %568 = vmatpush1.msra.mxu0 %v145
  %569 = vmatprep.subr.mxu0 %v154
  %570 = vmatpush1.msra.mxu0 %v153
  %571 = vmatprep.subr.mxu0 %v162
  %572 = vmatpush1.msra.mxu0 %v161
  %573 = vmatprep.subr.mxu0 0.0
  %574 = vmatpush1.msra.mxu0 0.0
  %575 = vmatprep.subr.mxu0 0.0
  %576 = vmatpush1.msra.mxu0 0.0
  %577 = vmatprep.subr.mxu0 0.0
  %578 = vmatpush1.msra.mxu0 0.0
  %579 = vmatprep.subr.mxu0 0.0
  %580 = vmatpush1.msra.mxu0 0.0
  %581 = vmatprep.subr.mxu0 0.0
  %582 = vmatpush1.msra.mxu0 0.0
  %583 = vmatprep.subr.mxu0 0.0
  %584 = vmatpush1.msra.mxu0 0.0
  %585 = vmatprep.subr.mxu0 0.0
  %586 = vmatpush1.msra.mxu0 0.0
  %587 = vmatprep.subr.mxu0 0.0
  %588 = vmatpush1.msra.mxu0 0.0
  %589 = vmatprep.subr.mxu0 0.0
  %590 = vmatpush1.msra.mxu0 0.0
  %591 = vmatprep.subr.mxu0 0.0
  %592 = vmatpush1.msra.mxu0 0.0
  %593 = vmatprep.subr.mxu0 0.0
  %594 = vmatpush1.msra.mxu0 0.0
  %595 = vmatprep.subr.mxu0 0.0
  %596 = vmatpush1.msra.mxu0 0.0
  %597 = vmatprep.subr.mxu0 0.0
  %598 = vmatpush1.msra.mxu0 0.0
  %599 = vmatprep.subr.mxu0 0.0
  %600 = vmatpush1.msra.mxu0 0.0
  %601 = vmatprep.subr.mxu0 0.0
  %602 = vmatpush1.msra.mxu0 0.0
  %603 = vmatprep.subr.mxu0 0.0
  %604 = vmatpush1.msra.mxu0 0.0
  %605 = vmatprep.mubr.f32.mxu0 0.0
  %606 = vmatmul.mubr.f32.gmra.mrb[0].mxu0 %v20
  %v607 = vpop.f32.mrb[0].mxu0
  %v608 = vadd.f32 %v186, %v607
  %v609 = vpop.f32.mrb[0].mxu0
  %v610 = vadd.f32 %v190, %v609
  %611 = vmatprep.mubr.f32.mxu0 0.0
  %612 = vmatmul.mubr.f32.gmra.mrb[0].mxu0 %v21
  %v613 = vpop.f32.mrb[0].mxu0
  %v614 = vadd.f32 %v186, %v613
  %v615 = vpop.f32.mrb[0].mxu0
  %v616 = vadd.f32 %v190, %v615
  %617 = vmatprep.mubr.f32.mxu0 0.0
  %618 = vmatmul.mubr.f32.gmra.mrb[0].mxu0 %v22
  %v619 = vpop.f32.mrb[0].mxu0
  %v620 = vadd.f32 %v186, %v619
  %v621 = vpop.f32.mrb[0].mxu0
  %v622 = vadd.f32 %v190, %v621
  %623 = vmatprep.mubr.f32.mxu0 0.0
  %624 = vmatmul.mubr.f32.gmra.mrb[0].mxu0 %v23
  %v625 = vpop.f32.mrb[0].mxu0
  %v626 = vadd.f32 %v186, %v625
  %v627 = vpop.f32.mrb[0].mxu0
  %v628 = vadd.f32 %v190, %v627
  %629 = vmatprep.mubr.f32.mxu0 0.0
  %630 = vmatmul.mubr.f32.gmra.mrb[0].mxu0 %v24
  %v631 = vpop.f32.mrb[0].mxu0
  %v632 = vadd.f32 %v186, %v631
  %v633 = vpop.f32.mrb[0].mxu0
  %v634 = vadd.f32 %v190, %v633
  %635 = vmatprep.mubr.f32.mxu0 0.0
  %636 = vmatmul.mubr.f32.gmra.mrb[0].mxu0 %v25
  %v637 = vpop.f32.mrb[0].mxu0
  %v638 = vadd.f32 %v186, %v637
  %v639 = vpop.f32.mrb[0].mxu0
  %v640 = vadd.f32 %v190, %v639
  %641 = vmatprep.mubr.f32.mxu0 0.0
  %642 = vmatmul.mubr.f32.gmra.mrb[0].mxu0 %v26
  %v643 = vpop.f32.mrb[0].mxu0
  %v644 = vadd.f32 %v186, %v643
  %v645 = vpop.f32.mrb[0].mxu0
  %v646 = vadd.f32 %v190, %v645
  %647 = vmatprep.mubr.f32.mxu0 0.0
  %648 = vmatmul.mubr.f32.gmra.mrb[0].mxu0 %v27
  %v649 = vpop.f32.mrb[0].mxu0
  %v650 = vadd.f32 %v186, %v649
  %v651 = vpop.f32.mrb[0].mxu0
  %v652 = vadd.f32 %v190, %v651
  %653 = vmatprep.mubr.f32.mxu0 0.0
  %654 = vmatmul.mubr.f32.gmra.mrb[0].mxu0 %v28
  %v655 = vpop.f32.mrb[0].mxu0
  %v656 = vadd.f32 %v186, %v655
  %v657 = vpop.f32.mrb[0].mxu0
  %v658 = vadd.f32 %v190, %v657
  %659 = vmatprep.mubr.f32.mxu0 0.0
  %660 = vmatmul.mubr.f32.gmra.mrb[0].mxu0 %v29
  %v661 = vpop.f32.mrb[0].mxu0
  %v662 = vadd.f32 %v186, %v661
  %v663 = vpop.f32.mrb[0].mxu0
  %v664 = vadd.f32 %v190, %v663
  %665 = vmatprep.mubr.f32.mxu0 0.0
  %666 = vmatmul.mubr.f32.gmra.mrb[0].mxu0 %v30
  %v667 = vpop.f32.mrb[0].mxu0
  %v668 = vadd.f32 %v186, %v667
  %v669 = vpop.f32.mrb[0].mxu0
  %v670 = vadd.f32 %v190, %v669
  %671 = vmatprep.mubr.f32.mxu0 0.0
  %672 = vmatmul.mubr.f32.gmra.mrb[0].mxu0 %v31
  %v673 = vpop.f32.mrb[0].mxu0
  %v674 = vadd.f32 %v186, %v673
  %v675 = vpop.f32.mrb[0].mxu0
  %v676 = vadd.f32 %v190, %v675
  %677 = vmatprep.mubr.f32.mxu0 0.0
  %678 = vmatmul.mubr.f32.gmra.mrb[0].mxu0 %v32
  %v679 = vpop.f32.mrb[0].mxu0
  %v680 = vadd.f32 %v186, %v679
  %v681 = vpop.f32.mrb[0].mxu0
  %v682 = vadd.f32 %v190, %v681
  %683 = vmatprep.mubr.f32.mxu0 0.0
  %684 = vmatmul.mubr.f32.gmra.mrb[0].mxu0 %v33
  %v685 = vpop.f32.mrb[0].mxu0
  %v686 = vadd.f32 %v186, %v685
  %v687 = vpop.f32.mrb[0].mxu0
  %v688 = vadd.f32 %v190, %v687
  %689 = vmatprep.mubr.f32.mxu0 0.0
  %690 = vmatmul.mubr.f32.gmra.mrb[0].mxu0 %v34
  %v691 = vpop.f32.mrb[0].mxu0
  %v692 = vadd.f32 %v186, %v691
  %v693 = vpop.f32.mrb[0].mxu0
  %v694 = vadd.f32 %v190, %v693
  %695 = vmatprep.mubr.f32.mxu0 0.0
  %696 = vmatmul.mubr.f32.gmra.mrb[0].mxu0 %v35
  %v697 = vpop.f32.mrb[0].mxu0
  %v698 = vadd.f32 %v186, %v697
  %v699 = vpop.f32.mrb[0].mxu0
  %v700 = vadd.f32 %v190, %v699
  %701 = vmatprep.mubr.f32.mxu0 0.0
  %702 = vmatmul.mubr.f32.gmra.mrb[0].mxu0 %v36
  %v703 = vpop.f32.mrb[0].mxu0
  %v704 = vadd.f32 %v186, %v703
  %v705 = vpop.f32.mrb[0].mxu0
  %v706 = vadd.f32 %v190, %v705
  %707 = vdwg.mxu0
  %708 = vmatprep.subr.mxu0 %v44
  %709 = vmatpush1.msra.mxu0 %v43
  %710 = vmatprep.subr.mxu0 %v52
  %711 = vmatpush1.msra.mxu0 %v51
  %712 = vmatprep.subr.mxu0 %v60
  %713 = vmatpush1.msra.mxu0 %v59
  %714 = vmatprep.subr.mxu0 %v68
  %715 = vmatpush1.msra.mxu0 %v67
  %716 = vmatprep.subr.mxu0 %v76
  %717 = vmatpush1.msra.mxu0 %v75
  %718 = vmatprep.subr.mxu0 %v84
  %719 = vmatpush1.msra.mxu0 %v83
  %720 = vmatprep.subr.mxu0 %v92
  %721 = vmatpush1.msra.mxu0 %v91
  %722 = vmatprep.subr.mxu0 %v100
  %723 = vmatpush1.msra.mxu0 %v99
  %724 = vmatprep.subr.mxu0 %v108
  %725 = vmatpush1.msra.mxu0 %v107
  %726 = vmatprep.subr.mxu0 %v116
  %727 = vmatpush1.msra.mxu0 %v115
  %728 = vmatprep.subr.mxu0 %v124
  %729 = vmatpush1.msra.mxu0 %v123
  %730 = vmatprep.subr.mxu0 %v132
  %731 = vmatpush1.msra.mxu0 %v131
  %732 = vmatprep.subr.mxu0 %v140
  %733 = vmatpush1.msra.mxu0 %v139
  %734 = vmatprep.subr.mxu0 %v148
  %735 = vmatpush1.msra.mxu0 %v147
  %736 = vmatprep.subr.mxu0 %v156
  %737 = vmatpush1.msra.mxu0 %v155
  %738 = vmatprep.subr.mxu0 %v164
  %739 = vmatpush1.msra.mxu0 %v163
  %740 = vmatprep.subr.mxu0 0.0
  %741 = vmatpush1.msra.mxu0 0.0
  %742 = vmatprep.subr.mxu0 0.0
  %743 = vmatpush1.msra.mxu0 0.0
  %744 = vmatprep.subr.mxu0 0.0
  %745 = vmatpush1.msra.mxu0 0.0
  %746 = vmatprep.subr.mxu0 0.0
  %747 = vmatpush1.msra.mxu0 0.0
  %748 = vmatprep.subr.mxu0 0.0
  %749 = vmatpush1.msra.mxu0 0.0
  %750 = vmatprep.subr.mxu0 0.0
  %751 = vmatpush1.msra.mxu0 0.0
  %752 = vmatprep.subr.mxu0 0.0
  %753 = vmatpush1.msra.mxu0 0.0
  %754 = vmatprep.subr.mxu0 0.0
  %755 = vmatpush1.msra.mxu0 0.0
  %756 = vmatprep.subr.mxu0 0.0
  %757 = vmatpush1.msra.mxu0 0.0
  %758 = vmatprep.subr.mxu0 0.0
  %759 = vmatpush1.msra.mxu0 0.0
  %760 = vmatprep.subr.mxu0 0.0
  %761 = vmatpush1.msra.mxu0 0.0
  %762 = vmatprep.subr.mxu0 0.0
  %763 = vmatpush1.msra.mxu0 0.0
  %764 = vmatprep.subr.mxu0 0.0
  %765 = vmatpush1.msra.mxu0 0.0
  %766 = vmatprep.subr.mxu0 0.0
  %767 = vmatpush1.msra.mxu0 0.0
  %768 = vmatprep.subr.mxu0 0.0
  %769 = vmatpush1.msra.mxu0 0.0
  %770 = vmatprep.subr.mxu0 0.0
  %771 = vmatpush1.msra.mxu0 0.0
  %772 = vmatprep.mubr.f32.mxu0 0.0
  %773 = vmatmul.mubr.f32.gmra.mrb[0].mxu0 %v20
  %v774 = vpop.f32.mrb[0].mxu0
  %v775 = vadd.f32 %v194, %v774
  %v776 = vpop.f32.mrb[0].mxu0
  %v777 = vadd.f32 %v198, %v776
  %778 = vmatprep.mubr.f32.mxu0 0.0
  %779 = vmatmul.mubr.f32.gmra.mrb[0].mxu0 %v21
  %v780 = vpop.f32.mrb[0].mxu0
  %v781 = vadd.f32 %v194, %v780
  %v782 = vpop.f32.mrb[0].mxu0
  %v783 = vadd.f32 %v198, %v782
  %784 = vmatprep.mubr.f32.mxu0 0.0
  %785 = vmatmul.mubr.f32.gmra.mrb[0].mxu0 %v22
  %v786 = vpop.f32.mrb[0].mxu0
  %v787 = vadd.f32 %v194, %v786
  %v788 = vpop.f32.mrb[0].mxu0
  %v789 = vadd.f32 %v198, %v788
  %790 = vmatprep.mubr.f32.mxu0 0.0
  %791 = vmatmul.mubr.f32.gmra.mrb[0].mxu0 %v23
  %v792 = vpop.f32.mrb[0].mxu0
  %v793 = vadd.f32 %v194, %v792
  %v794 = vpop.f32.mrb[0].mxu0
  %v795 = vadd.f32 %v198, %v794
  %796 = vmatprep.mubr.f32.mxu0 0.0
  %797 = vmatmul.mubr.f32.gmra.mrb[0].mxu0 %v24
  %v798 = vpop.f32.mrb[0].mxu0
  %v799 = vadd.f32 %v194, %v798
  %v800 = vpop.f32.mrb[0].mxu0
  %v801 = vadd.f32 %v198, %v800
  %802 = vmatprep.mubr.f32.mxu0 0.0
  %803 = vmatmul.mubr.f32.gmra.mrb[0].mxu0 %v25
  %v804 = vpop.f32.mrb[0].mxu0
  %v805 = vadd.f32 %v194, %v804
  %v806 = vpop.f32.mrb[0].mxu0
  %v807 = vadd.f32 %v198, %v806
  %808 = vmatprep.mubr.f32.mxu0 0.0
  %809 = vmatmul.mubr.f32.gmra.mrb[0].mxu0 %v26
  %v810 = vpop.f32.mrb[0].mxu0
  %v811 = vadd.f32 %v194, %v810
  %v812 = vpop.f32.mrb[0].mxu0
  %v813 = vadd.f32 %v198, %v812
  %814 = vmatprep.mubr.f32.mxu0 0.0
  %815 = vmatmul.mubr.f32.gmra.mrb[0].mxu0 %v27
  %v816 = vpop.f32.mrb[0].mxu0
  %v817 = vadd.f32 %v194, %v816
  %v818 = vpop.f32.mrb[0].mxu0
  %v819 = vadd.f32 %v198, %v818
  %820 = vmatprep.mubr.f32.mxu0 0.0
  %821 = vmatmul.mubr.f32.gmra.mrb[0].mxu0 %v28
  %v822 = vpop.f32.mrb[0].mxu0
  %v823 = vadd.f32 %v194, %v822
  %v824 = vpop.f32.mrb[0].mxu0
  %v825 = vadd.f32 %v198, %v824
  %826 = vmatprep.mubr.f32.mxu0 0.0
  %827 = vmatmul.mubr.f32.gmra.mrb[0].mxu0 %v29
  %v828 = vpop.f32.mrb[0].mxu0
  %v829 = vadd.f32 %v194, %v828
  %v830 = vpop.f32.mrb[0].mxu0
  %v831 = vadd.f32 %v198, %v830
  %832 = vmatprep.mubr.f32.mxu0 0.0
  %833 = vmatmul.mubr.f32.gmra.mrb[0].mxu0 %v30
  %v834 = vpop.f32.mrb[0].mxu0
  %v835 = vadd.f32 %v194, %v834
  %v836 = vpop.f32.mrb[0].mxu0
  %v837 = vadd.f32 %v198, %v836
  %838 = vmatprep.mubr.f32.mxu0 0.0
  %839 = vmatmul.mubr.f32.gmra.mrb[0].mxu0 %v31
  %v840 = vpop.f32.mrb[0].mxu0
  %v841 = vadd.f32 %v194, %v840
  %v842 = vpop.f32.mrb[0].mxu0
  %v843 = vadd.f32 %v198, %v842
  %844 = vmatprep.mubr.f32.mxu0 0.0
  %845 = vmatmul.mubr.f32.gmra.mrb[0].mxu0 %v32
  %v846 = vpop.f32.mrb[0].mxu0
  %v847 = vadd.f32 %v194, %v846
  %v848 = vpop.f32.mrb[0].mxu0
  %v849 = vadd.f32 %v198, %v848
  %850 = vmatprep.mubr.f32.mxu0 0.0
  %851 = vmatmul.mubr.f32.gmra.mrb[0].mxu0 %v33
  %v852 = vpop.f32.mrb[0].mxu0
  %v853 = vadd.f32 %v194, %v852
  %v854 = vpop.f32.mrb[0].mxu0
  %v855 = vadd.f32 %v198, %v854
  %856 = vmatprep.mubr.f32.mxu0 0.0
  %857 = vmatmul.mubr.f32.gmra.mrb[0].mxu0 %v34
  %v858 = vpop.f32.mrb[0].mxu0
  %v859 = vadd.f32 %v194, %v858
  %v860 = vpop.f32.mrb[0].mxu0
  %v861 = vadd.f32 %v198, %v860
  %862 = vmatprep.mubr.f32.mxu0 0.0
  %863 = vmatmul.mubr.f32.gmra.mrb[0].mxu0 %v35
  %v864 = vpop.f32.mrb[0].mxu0
  %v865 = vadd.f32 %v194, %v864
  %v866 = vpop.f32.mrb[0].mxu0
  %v867 = vadd.f32 %v198, %v866
  %868 = vmatprep.mubr.f32.mxu0 0.0
  %869 = vmatmul.mubr.f32.gmra.mrb[0].mxu0 %v36
  %v870 = vpop.f32.mrb[0].mxu0
  %v871 = vadd.f32 %v194, %v870
  %v872 = vpop.f32.mrb[0].mxu0
  %v873 = vadd.f32 %v198, %v872
  %874 = vdwg.mxu0
  %v875 = vmax.f32 %v274, 0.0
  %v876 = vmax.f32 %v276, 0.0
  %v877 = vmax.f32 %v441, 0.0
  %v878 = vmax.f32 %v443, 0.0
  %v879 = vmax.f32 %v608, 0.0
  %v880 = vmax.f32 %v610, 0.0
  %v881 = vmax.f32 %v775, 0.0
  %v882 = vmax.f32 %v777, 0.0
  %v883 = vmax.f32 %v280, 0.0
  %v884 = vmax.f32 %v282, 0.0
  %v885 = vmax.f32 %v447, 0.0
  %v886 = vmax.f32 %v449, 0.0
  %v887 = vmax.f32 %v614, 0.0
  %v888 = vmax.f32 %v616, 0.0
  %v889 = vmax.f32 %v781, 0.0
  %v890 = vmax.f32 %v783, 0.0
  %v891 = vmax.f32 %v286, 0.0
  %v892 = vmax.f32 %v288, 0.0
  %v893 = vmax.f32 %v453, 0.0
  %v894 = vmax.f32 %v455, 0.0
  %v895 = vmax.f32 %v620, 0.0
  %v896 = vmax.f32 %v622, 0.0
  %v897 = vmax.f32 %v787, 0.0
  %v898 = vmax.f32 %v789, 0.0
  %v899 = vmax.f32 %v292, 0.0
  %v900 = vmax.f32 %v294, 0.0
  %v901 = vmax.f32 %v459, 0.0
  %v902 = vmax.f32 %v461, 0.0
  %v903 = vmax.f32 %v626, 0.0
  %v904 = vmax.f32 %v628, 0.0
  %v905 = vmax.f32 %v793, 0.0
  %v906 = vmax.f32 %v795, 0.0
  %v907 = vmax.f32 %v298, 0.0
  %v908 = vmax.f32 %v300, 0.0
  %v909 = vmax.f32 %v465, 0.0
  %v910 = vmax.f32 %v467, 0.0
  %v911 = vmax.f32 %v632, 0.0
  %v912 = vmax.f32 %v634, 0.0
  %v913 = vmax.f32 %v799, 0.0
  %v914 = vmax.f32 %v801, 0.0
  %v915 = vmax.f32 %v304, 0.0
  %v916 = vmax.f32 %v306, 0.0
  %v917 = vmax.f32 %v471, 0.0
  %v918 = vmax.f32 %v473, 0.0
  %v919 = vmax.f32 %v638, 0.0
  %v920 = vmax.f32 %v640, 0.0
  %v921 = vmax.f32 %v805, 0.0
  %v922 = vmax.f32 %v807, 0.0
  %v923 = vmax.f32 %v310, 0.0
  %v924 = vmax.f32 %v312, 0.0
  %v925 = vmax.f32 %v477, 0.0
  %v926 = vmax.f32 %v479, 0.0
  %v927 = vmax.f32 %v644, 0.0
  %v928 = vmax.f32 %v646, 0.0
  %v929 = vmax.f32 %v811, 0.0
  %v930 = vmax.f32 %v813, 0.0
  %v931 = vmax.f32 %v316, 0.0
  %v932 = vmax.f32 %v318, 0.0
  %v933 = vmax.f32 %v483, 0.0
  %v934 = vmax.f32 %v485, 0.0
  %v935 = vmax.f32 %v650, 0.0
  %v936 = vmax.f32 %v652, 0.0
  %v937 = vmax.f32 %v817, 0.0
  %v938 = vmax.f32 %v819, 0.0
  %v939 = vmax.f32 %v322, 0.0
  %v940 = vmax.f32 %v324, 0.0
  %v941 = vmax.f32 %v489, 0.0
  %v942 = vmax.f32 %v491, 0.0
  %v943 = vmax.f32 %v656, 0.0
  %v944 = vmax.f32 %v658, 0.0
  %v945 = vmax.f32 %v823, 0.0
  %v946 = vmax.f32 %v825, 0.0
  %v947 = vmax.f32 %v328, 0.0
  %v948 = vmax.f32 %v330, 0.0
  %v949 = vmax.f32 %v495, 0.0
  %v950 = vmax.f32 %v497, 0.0
  %v951 = vmax.f32 %v662, 0.0
  %v952 = vmax.f32 %v664, 0.0
  %v953 = vmax.f32 %v829, 0.0
  %v954 = vmax.f32 %v831, 0.0
  %v955 = vmax.f32 %v334, 0.0
  %v956 = vmax.f32 %v336, 0.0
  %v957 = vmax.f32 %v501, 0.0
  %v958 = vmax.f32 %v503, 0.0
  %v959 = vmax.f32 %v668, 0.0
  %v960 = vmax.f32 %v670, 0.0
  %v961 = vmax.f32 %v835, 0.0
  %v962 = vmax.f32 %v837, 0.0
  %v963 = vmax.f32 %v340, 0.0
  %v964 = vmax.f32 %v342, 0.0
  %v965 = vmax.f32 %v507, 0.0
  %v966 = vmax.f32 %v509, 0.0
  %v967 = vmax.f32 %v674, 0.0
  %v968 = vmax.f32 %v676, 0.0
  %v969 = vmax.f32 %v841, 0.0
  %v970 = vmax.f32 %v843, 0.0
  %v971 = vmax.f32 %v346, 0.0
  %v972 = vmax.f32 %v348, 0.0
  %v973 = vmax.f32 %v513, 0.0
  %v974 = vmax.f32 %v515, 0.0
  %v975 = vmax.f32 %v680, 0.0
  %v976 = vmax.f32 %v682, 0.0
  %v977 = vmax.f32 %v847, 0.0
  %v978 = vmax.f32 %v849, 0.0
  %v979 = vmax.f32 %v352, 0.0
  %v980 = vmax.f32 %v354, 0.0
  %v981 = vmax.f32 %v519, 0.0
  %v982 = vmax.f32 %v521, 0.0
  %v983 = vmax.f32 %v686, 0.0
  %v984 = vmax.f32 %v688, 0.0
  %v985 = vmax.f32 %v853, 0.0
  %v986 = vmax.f32 %v855, 0.0
  %v987 = vmax.f32 %v358, 0.0
  %v988 = vmax.f32 %v360, 0.0
  %v989 = vmax.f32 %v525, 0.0
  %v990 = vmax.f32 %v527, 0.0
  %v991 = vmax.f32 %v692, 0.0
  %v992 = vmax.f32 %v694, 0.0
  %v993 = vmax.f32 %v859, 0.0
  %v994 = vmax.f32 %v861, 0.0
  %v995 = vmax.f32 %v364, 0.0
  %v996 = vmax.f32 %v366, 0.0
  %v997 = vmax.f32 %v531, 0.0
  %v998 = vmax.f32 %v533, 0.0
  %v999 = vmax.f32 %v698, 0.0
  %v1000 = vmax.f32 %v700, 0.0
  %v1001 = vmax.f32 %v865, 0.0
  %v1002 = vmax.f32 %v867, 0.0
  %v1003 = vmax.f32 %v370, 0.0
  %v1004 = vmax.f32 %v372, 0.0
  %v1005 = vmax.f32 %v537, 0.0
  %v1006 = vmax.f32 %v539, 0.0
  %v1007 = vmax.f32 %v704, 0.0
  %v1008 = vmax.f32 %v706, 0.0
  %v1009 = vmax.f32 %v871, 0.0
  %v1010 = vmax.f32 %v873, 0.0
  %v1011 = vld [vmem:[%s3] sm:$0xff]
  %v1012 = vld [vmem:[%s3 + $0x8] sm:$0xff]
  %v1013 = vld [vmem:[%s3 + $0x10] sm:$0xff]
  %v1014 = vld [vmem:[%s3 + $0x18] sm:$0xff]
  %v1015 = vld [vmem:[%s3 + $0x20] sm:$0xff]
  %v1016 = vld [vmem:[%s3 + $0x28] sm:$0xff]
  %v1017 = vld [vmem:[%s3 + $0x30] sm:$0xff]
  %v1018 = vld [vmem:[%s3 + $0x38] sm:$0xff]
  %v1019 = vld [vmem:[%s3 + $0x40] sm:$0xff]
  %v1020 = vld [vmem:[%s3 + $0x48] sm:$0xff]
  %v1021 = vld [vmem:[%s3 + $0x50] sm:$0xff]
  %v1022 = vld [vmem:[%s3 + $0x58] sm:$0xff]
  %v1023 = vld [vmem:[%s3 + $0x60] sm:$0xff]
  %v1024 = vld [vmem:[%s3 + $0x68] sm:$0xff]
  %v1025 = vld [vmem:[%s3 + $0x70] sm:$0xff]
  %v1026 = vld [vmem:[%s3 + $0x78] sm:$0xff]
  %v1027 = vld [vmem:[%s3 + $0x80] sm:$0xff]
  %v1028 = vld [vmem:[%s3 + $0x88] sm:$0xff]
  %v1029 = vld [vmem:[%s3 + $0x90] sm:$0xff]
  %v1030 = vld [vmem:[%s3 + $0x98] sm:$0xff]
  %v1031 = vld [vmem:[%s3 + $0xa0] sm:$0xff]
  %v1032 = vld [vmem:[%s3 + $0xa8] sm:$0xff]
  %v1033 = vld [vmem:[%s3 + $0xb0] sm:$0xff]
  %v1034 = vld [vmem:[%s3 + $0xb8] sm:$0xff]
  %v1035 = vld [vmem:[%s3 + $0xc0] sm:$0xff]
  %v1036 = vld [vmem:[%s3 + $0xc8] sm:$0xff]
  %v1037 = vld [vmem:[%s3 + $0xd0] sm:$0xff]
  %v1038 = vld [vmem:[%s3 + $0xd8] sm:$0xff]
  %v1039 = vld [vmem:[%s3 + $0xe0] sm:$0xff]
  %v1040 = vld [vmem:[%s3 + $0xe8] sm:$0xff]
  %v1041 = vld [vmem:[%s3 + $0xf0] sm:$0xff]
  %v1042 = vld [vmem:[%s3 + $0xf8] sm:$0xff]
  %v1043 = vld [vmem:[%s3 + $0x100] sm:$0xff]
  %v1044 = vld [vmem:[%s3 + $0x108] sm:$0xff]
  %v1045 = vld [vmem:[%s3 + $0x110] sm:$0xff]
  %v1046 = vld [vmem:[%s3 + $0x118] sm:$0xff]
  %v1047 = vld [vmem:[%s3 + $0x120] sm:$0xff]
  %v1048 = vld [vmem:[%s3 + $0x128] sm:$0xff]
  %v1049 = vld [vmem:[%s3 + $0x130] sm:$0xff]
  %v1050 = vld [vmem:[%s3 + $0x138] sm:$0xff]
  %v1051 = vld [vmem:[%s3 + $0x140] sm:$0xff]
  %v1052 = vld [vmem:[%s3 + $0x148] sm:$0xff]
  %v1053 = vld [vmem:[%s3 + $0x150] sm:$0xff]
  %v1054 = vld [vmem:[%s3 + $0x158] sm:$0xff]
  %v1055 = vld [vmem:[%s3 + $0x160] sm:$0xff]
  %v1056 = vld [vmem:[%s3 + $0x168] sm:$0xff]
  %v1057 = vld [vmem:[%s3 + $0x170] sm:$0xff]
  %v1058 = vld [vmem:[%s3 + $0x178] sm:$0xff]
  %v1059 = vld [vmem:[%s3 + $0x180] sm:$0xff]
  %v1060 = vld [vmem:[%s3 + $0x188] sm:$0xff]
  %v1061 = vld [vmem:[%s3 + $0x190] sm:$0xff]
  %v1062 = vld [vmem:[%s3 + $0x198] sm:$0xff]
  %v1063 = vld [vmem:[%s3 + $0x1a0] sm:$0xff]
  %v1064 = vld [vmem:[%s3 + $0x1a8] sm:$0xff]
  %v1065 = vld [vmem:[%s3 + $0x1b0] sm:$0xff]
  %v1066 = vld [vmem:[%s3 + $0x1b8] sm:$0xff]
  %v1067 = vld [vmem:[%s3 + $0x1c0] sm:$0xff]
  %v1068 = vld [vmem:[%s3 + $0x1c8] sm:$0xff]
  %v1069 = vld [vmem:[%s3 + $0x1d0] sm:$0xff]
  %v1070 = vld [vmem:[%s3 + $0x1d8] sm:$0xff]
  %v1071 = vld [vmem:[%s3 + $0x1e0] sm:$0xff]
  %v1072 = vld [vmem:[%s3 + $0x1e8] sm:$0xff]
  %v1073 = vld [vmem:[%s3 + $0x1f0] sm:$0xff]
  %v1074 = vld [vmem:[%s3 + $0x1f8] sm:$0xff]
  %v1075 = vld [vmem:[%s3 + $0x200] sm:$0xff]
  %v1076 = vld [vmem:[%s3 + $0x208] sm:$0xff]
  %v1077 = vld [vmem:[%s3 + $0x210] sm:$0xff]
  %v1078 = vld [vmem:[%s3 + $0x218] sm:$0xff]
  %v1079 = vld [vmem:[%s3 + $0x220] sm:$0xff]
  %v1080 = vld [vmem:[%s3 + $0x228] sm:$0xff]
  %v1081 = vld [vmem:[%s3 + $0x230] sm:$0xff]
  %v1082 = vld [vmem:[%s3 + $0x238] sm:$0xff]
  %v1083 = vld [vmem:[%s3 + $0x240] sm:$0xff]
  %v1084 = vld [vmem:[%s3 + $0x248] sm:$0xff]
  %v1085 = vld [vmem:[%s3 + $0x250] sm:$0xff]
  %v1086 = vld [vmem:[%s3 + $0x258] sm:$0xff]
  %v1087 = vld [vmem:[%s3 + $0x260] sm:$0xff]
  %v1088 = vld [vmem:[%s3 + $0x268] sm:$0xff]
  %v1089 = vld [vmem:[%s3 + $0x270] sm:$0xff]
  %v1090 = vld [vmem:[%s3 + $0x278] sm:$0xff]
  %v1091 = vld [vmem:[%s3 + $0x280] sm:$0xff]
  %v1092 = vld [vmem:[%s3 + $0x288] sm:$0xff]
  %v1093 = vld [vmem:[%s3 + $0x290] sm:$0xff]
  %v1094 = vld [vmem:[%s3 + $0x298] sm:$0xff]
  %v1095 = vld [vmem:[%s3 + $0x2a0] sm:$0xff]
  %v1096 = vld [vmem:[%s3 + $0x2a8] sm:$0xff]
  %v1097 = vld [vmem:[%s3 + $0x2b0] sm:$0xff]
  %v1098 = vld [vmem:[%s3 + $0x2b8] sm:$0xff]
  %v1099 = vld [vmem:[%s3 + $0x2c0] sm:$0xff]
  %v1100 = vld [vmem:[%s3 + $0x2c8] sm:$0xff]
  %v1101 = vld [vmem:[%s3 + $0x2d0] sm:$0xff]
  %v1102 = vld [vmem:[%s3 + $0x2d8] sm:$0xff]
  %v1103 = vld [vmem:[%s3 + $0x2e0] sm:$0xff]
  %v1104 = vld [vmem:[%s3 + $0x2e8] sm:$0xff]
  %v1105 = vld [vmem:[%s3 + $0x2f0] sm:$0xff]
  %v1106 = vld [vmem:[%s3 + $0x2f8] sm:$0xff]
  %v1107 = vld [vmem:[%s3 + $0x300] sm:$0xff]
  %v1108 = vld [vmem:[%s3 + $0x308] sm:$0xff]
  %v1109 = vld [vmem:[%s3 + $0x310] sm:$0xff]
  %v1110 = vld [vmem:[%s3 + $0x318] sm:$0xff]
  %v1111 = vld [vmem:[%s3 + $0x320] sm:$0xff]
  %v1112 = vld [vmem:[%s3 + $0x328] sm:$0xff]
  %v1113 = vld [vmem:[%s3 + $0x330] sm:$0xff]
  %v1114 = vld [vmem:[%s3 + $0x338] sm:$0xff]
  %v1115 = vld [vmem:[%s3 + $0x340] sm:$0xff]
  %v1116 = vld [vmem:[%s3 + $0x348] sm:$0xff]
  %v1117 = vld [vmem:[%s3 + $0x350] sm:$0xff]
  %v1118 = vld [vmem:[%s3 + $0x358] sm:$0xff]
  %v1119 = vld [vmem:[%s3 + $0x360] sm:$0xff]
  %v1120 = vld [vmem:[%s3 + $0x368] sm:$0xff]
  %v1121 = vld [vmem:[%s3 + $0x370] sm:$0xff]
  %v1122 = vld [vmem:[%s3 + $0x378] sm:$0xff]
  %v1123 = vld [vmem:[%s3 + $0x380] sm:$0xff]
  %v1124 = vld [vmem:[%s3 + $0x388] sm:$0xff]
  %v1125 = vld [vmem:[%s3 + $0x390] sm:$0xff]
  %v1126 = vld [vmem:[%s3 + $0x398] sm:$0xff]
  %v1127 = vld [vmem:[%s3 + $0x3a0] sm:$0xff]
  %v1128 = vld [vmem:[%s3 + $0x3a8] sm:$0xff]
  %v1129 = vld [vmem:[%s3 + $0x3b0] sm:$0xff]
  %v1130 = vld [vmem:[%s3 + $0x3b8] sm:$0xff]
  %v1131 = vld [vmem:[%s3 + $0x3c0] sm:$0xff]
  %v1132 = vld [vmem:[%s3 + $0x3c8] sm:$0xff]
  %v1133 = vld [vmem:[%s3 + $0x3d0] sm:$0xff]
  %v1134 = vld [vmem:[%s3 + $0x3d8] sm:$0xff]
  %v1135 = vld [vmem:[%s3 + $0x3e0] sm:$0xff]
  %v1136 = vld [vmem:[%s3 + $0x3e8] sm:$0xff]
  %v1137 = vld [vmem:[%s3 + $0x3f0] sm:$0xff]
  %v1138 = vld [vmem:[%s3 + $0x3f8] sm:$0xff]
  %v1139 = vld [vmem:[%s4] sm:$0x1]
  %v1141 = vlaneseq
  %v1142 = vshrl.u32 %v1141, 7
  %v1143 = vsub.s32 0, %v1142
  %v1144 = vrot.slane %v1139, %v1143
  %1146 = vmatprep.subr.mxu0 0.0
  %1147 = vmatpush1.msra.mxu0 %v1011
  %1148 = vmatprep.subr.mxu0 0.0
  %1149 = vmatpush1.msra.mxu0 %v1012
  %1150 = vmatprep.subr.mxu0 0.0
  %1151 = vmatpush1.msra.mxu0 %v1013
  %1152 = vmatprep.subr.mxu0 0.0
  %1153 = vmatpush1.msra.mxu0 %v1014
  %1154 = vmatprep.subr.mxu0 0.0
  %1155 = vmatpush1.msra.mxu0 %v1015
  %1156 = vmatprep.subr.mxu0 0.0
  %1157 = vmatpush1.msra.mxu0 %v1016
  %1158 = vmatprep.subr.mxu0 0.0
  %1159 = vmatpush1.msra.mxu0 %v1017
  %1160 = vmatprep.subr.mxu0 0.0
  %1161 = vmatpush1.msra.mxu0 %v1018
  %1162 = vmatprep.subr.mxu0 0.0
  %1163 = vmatpush1.msra.mxu0 %v1019
  %1164 = vmatprep.subr.mxu0 0.0
  %1165 = vmatpush1.msra.mxu0 %v1020
  %1166 = vmatprep.subr.mxu0 0.0
  %1167 = vmatpush1.msra.mxu0 %v1021
  %1168 = vmatprep.subr.mxu0 0.0
  %1169 = vmatpush1.msra.mxu0 %v1022
  %1170 = vmatprep.subr.mxu0 0.0
  %1171 = vmatpush1.msra.mxu0 %v1023
  %1172 = vmatprep.subr.mxu0 0.0
  %1173 = vmatpush1.msra.mxu0 %v1024
  %1174 = vmatprep.subr.mxu0 0.0
  %1175 = vmatpush1.msra.mxu0 %v1025
  %1176 = vmatprep.subr.mxu0 0.0
  %1177 = vmatpush1.msra.mxu0 %v1026
  %1178 = vmatprep.subr.mxu0 0.0
  %1179 = vmatpush1.msra.mxu0 %v1027
  %1180 = vmatprep.subr.mxu0 0.0
  %1181 = vmatpush1.msra.mxu0 %v1028
  %1182 = vmatprep.subr.mxu0 0.0
  %1183 = vmatpush1.msra.mxu0 %v1029
  %1184 = vmatprep.subr.mxu0 0.0
  %1185 = vmatpush1.msra.mxu0 %v1030
  %1186 = vmatprep.subr.mxu0 0.0
  %1187 = vmatpush1.msra.mxu0 %v1031
  %1188 = vmatprep.subr.mxu0 0.0
  %1189 = vmatpush1.msra.mxu0 %v1032
  %1190 = vmatprep.subr.mxu0 0.0
  %1191 = vmatpush1.msra.mxu0 %v1033
  %1192 = vmatprep.subr.mxu0 0.0
  %1193 = vmatpush1.msra.mxu0 %v1034
  %1194 = vmatprep.subr.mxu0 0.0
  %1195 = vmatpush1.msra.mxu0 %v1035
  %1196 = vmatprep.subr.mxu0 0.0
  %1197 = vmatpush1.msra.mxu0 %v1036
  %1198 = vmatprep.subr.mxu0 0.0
  %1199 = vmatpush1.msra.mxu0 %v1037
  %1200 = vmatprep.subr.mxu0 0.0
  %1201 = vmatpush1.msra.mxu0 %v1038
  %1202 = vmatprep.subr.mxu0 0.0
  %1203 = vmatpush1.msra.mxu0 %v1039
  %1204 = vmatprep.subr.mxu0 0.0
  %1205 = vmatpush1.msra.mxu0 %v1040
  %1206 = vmatprep.subr.mxu0 0.0
  %1207 = vmatpush1.msra.mxu0 %v1041
  %1208 = vmatprep.subr.mxu0 0.0
  %1209 = vmatpush1.msra.mxu0 %v1042
  %1210 = vmatprep.mubr.f32.mxu0 %v876
  %1211 = vmatmul.mubr.f32.gmra.mrb[0].mxu0 %v875
  %v1212 = vpop.f32.mrb[0].mxu0
  %v1213 = vadd.f32 %v1144, %v1212
  %v1214 = vpop.f32.mrb[0].mxu0
  %1215 = vmatprep.mubr.f32.mxu0 %v884
  %1216 = vmatmul.mubr.f32.gmra.mrb[0].mxu0 %v883
  %v1217 = vpop.f32.mrb[0].mxu0
  %v1218 = vadd.f32 %v1144, %v1217
  %v1219 = vpop.f32.mrb[0].mxu0
  %1220 = vmatprep.mubr.f32.mxu0 %v892
  %1221 = vmatmul.mubr.f32.gmra.mrb[0].mxu0 %v891
  %v1222 = vpop.f32.mrb[0].mxu0
  %v1223 = vadd.f32 %v1144, %v1222
  %v1224 = vpop.f32.mrb[0].mxu0
  %1225 = vmatprep.mubr.f32.mxu0 %v900
  %1226 = vmatmul.mubr.f32.gmra.mrb[0].mxu0 %v899
  %v1227 = vpop.f32.mrb[0].mxu0
  %v1228 = vadd.f32 %v1144, %v1227
  %v1229 = vpop.f32.mrb[0].mxu0
  %1230 = vmatprep.mubr.f32.mxu0 %v908
  %1231 = vmatmul.mubr.f32.gmra.mrb[0].mxu0 %v907
  %v1232 = vpop.f32.mrb[0].mxu0
  %v1233 = vadd.f32 %v1144, %v1232
  %v1234 = vpop.f32.mrb[0].mxu0
  %1235 = vmatprep.mubr.f32.mxu0 %v916
  %1236 = vmatmul.mubr.f32.gmra.mrb[0].mxu0 %v915
  %v1237 = vpop.f32.mrb[0].mxu0
  %v1238 = vadd.f32 %v1144, %v1237
  %v1239 = vpop.f32.mrb[0].mxu0
  %1240 = vmatprep.mubr.f32.mxu0 %v924
  %1241 = vmatmul.mubr.f32.gmra.mrb[0].mxu0 %v923
  %v1242 = vpop.f32.mrb[0].mxu0
  %v1243 = vadd.f32 %v1144, %v1242
  %v1244 = vpop.f32.mrb[0].mxu0
  %1245 = vmatprep.mubr.f32.mxu0 %v932
  %1246 = vmatmul.mubr.f32.gmra.mrb[0].mxu0 %v931
  %v1247 = vpop.f32.mrb[0].mxu0
  %v1248 = vadd.f32 %v1144, %v1247
  %v1249 = vpop.f32.mrb[0].mxu0
  %1250 = vmatprep.mubr.f32.mxu0 %v940
  %1251 = vmatmul.mubr.f32.gmra.mrb[0].mxu0 %v939
  %v1252 = vpop.f32.mrb[0].mxu0
  %v1253 = vadd.f32 %v1144, %v1252
  %v1254 = vpop.f32.mrb[0].mxu0
  %1255 = vmatprep.mubr.f32.mxu0 %v948
  %1256 = vmatmul.mubr.f32.gmra.mrb[0].mxu0 %v947
  %v1257 = vpop.f32.mrb[0].mxu0
  %v1258 = vadd.f32 %v1144, %v1257
  %v1259 = vpop.f32.mrb[0].mxu0
  %1260 = vmatprep.mubr.f32.mxu0 %v956
  %1261 = vmatmul.mubr.f32.gmra.mrb[0].mxu0 %v955
  %v1262 = vpop.f32.mrb[0].mxu0
  %v1263 = vadd.f32 %v1144, %v1262
  %v1264 = vpop.f32.mrb[0].mxu0
  %1265 = vmatprep.mubr.f32.mxu0 %v964
  %1266 = vmatmul.mubr.f32.gmra.mrb[0].mxu0 %v963
  %v1267 = vpop.f32.mrb[0].mxu0
  %v1268 = vadd.f32 %v1144, %v1267
  %v1269 = vpop.f32.mrb[0].mxu0
  %1270 = vmatprep.mubr.f32.mxu0 %v972
  %1271 = vmatmul.mubr.f32.gmra.mrb[0].mxu0 %v971
  %v1272 = vpop.f32.mrb[0].mxu0
  %v1273 = vadd.f32 %v1144, %v1272
  %v1274 = vpop.f32.mrb[0].mxu0
  %1275 = vmatprep.mubr.f32.mxu0 %v980
  %1276 = vmatmul.mubr.f32.gmra.mrb[0].mxu0 %v979
  %v1277 = vpop.f32.mrb[0].mxu0
  %v1278 = vadd.f32 %v1144, %v1277
  %v1279 = vpop.f32.mrb[0].mxu0
  %1280 = vmatprep.mubr.f32.mxu0 %v988
  %1281 = vmatmul.mubr.f32.gmra.mrb[0].mxu0 %v987
  %v1282 = vpop.f32.mrb[0].mxu0
  %v1283 = vadd.f32 %v1144, %v1282
  %v1284 = vpop.f32.mrb[0].mxu0
  %1285 = vmatprep.mubr.f32.mxu0 %v996
  %1286 = vmatmul.mubr.f32.gmra.mrb[0].mxu0 %v995
  %v1287 = vpop.f32.mrb[0].mxu0
  %v1288 = vadd.f32 %v1144, %v1287
  %v1289 = vpop.f32.mrb[0].mxu0
  %1290 = vmatprep.mubr.f32.mxu0 %v1004
  %1291 = vmatmul.mubr.f32.gmra.mrb[0].mxu0 %v1003
  %v1292 = vpop.f32.mrb[0].mxu0
  %v1293 = vadd.f32 %v1144, %v1292
  %v1294 = vpop.f32.mrb[0].mxu0
  %1295 = vdwg.mxu0
  %1296 = vmatprep.subr.mxu0 0.0
  %1297 = vmatpush1.msra.mxu0 %v1043
  %1298 = vmatprep.subr.mxu0 0.0
  %1299 = vmatpush1.msra.mxu0 %v1044
  %1300 = vmatprep.subr.mxu0 0.0
  %1301 = vmatpush1.msra.mxu0 %v1045
  %1302 = vmatprep.subr.mxu0 0.0
  %1303 = vmatpush1.msra.mxu0 %v1046
  %1304 = vmatprep.subr.mxu0 0.0
  %1305 = vmatpush1.msra.mxu0 %v1047
  %1306 = vmatprep.subr.mxu0 0.0
  %1307 = vmatpush1.msra.mxu0 %v1048
  %1308 = vmatprep.subr.mxu0 0.0
  %1309 = vmatpush1.msra.mxu0 %v1049
  %1310 = vmatprep.subr.mxu0 0.0
  %1311 = vmatpush1.msra.mxu0 %v1050
  %1312 = vmatprep.subr.mxu0 0.0
  %1313 = vmatpush1.msra.mxu0 %v1051
  %1314 = vmatprep.subr.mxu0 0.0
  %1315 = vmatpush1.msra.mxu0 %v1052
  %1316 = vmatprep.subr.mxu0 0.0
  %1317 = vmatpush1.msra.mxu0 %v1053
  %1318 = vmatprep.subr.mxu0 0.0
  %1319 = vmatpush1.msra.mxu0 %v1054
  %1320 = vmatprep.subr.mxu0 0.0
  %1321 = vmatpush1.msra.mxu0 %v1055
  %1322 = vmatprep.subr.mxu0 0.0
  %1323 = vmatpush1.msra.mxu0 %v1056
  %1324 = vmatprep.subr.mxu0 0.0
  %1325 = vmatpush1.msra.mxu0 %v1057
  %1326 = vmatprep.subr.mxu0 0.0
  %1327 = vmatpush1.msra.mxu0 %v1058
  %1328 = vmatprep.subr.mxu0 0.0
  %1329 = vmatpush1.msra.mxu0 %v1059
  %1330 = vmatprep.subr.mxu0 0.0
  %1331 = vmatpush1.msra.mxu0 %v1060
  %1332 = vmatprep.subr.mxu0 0.0
  %1333 = vmatpush1.msra.mxu0 %v1061
  %1334 = vmatprep.subr.mxu0 0.0
  %1335 = vmatpush1.msra.mxu0 %v1062
  %1336 = vmatprep.subr.mxu0 0.0
  %1337 = vmatpush1.msra.mxu0 %v1063
  %1338 = vmatprep.subr.mxu0 0.0
  %1339 = vmatpush1.msra.mxu0 %v1064
  %1340 = vmatprep.subr.mxu0 0.0
  %1341 = vmatpush1.msra.mxu0 %v1065
  %1342 = vmatprep.subr.mxu0 0.0
  %1343 = vmatpush1.msra.mxu0 %v1066
  %1344 = vmatprep.subr.mxu0 0.0
  %1345 = vmatpush1.msra.mxu0 %v1067
  %1346 = vmatprep.subr.mxu0 0.0
  %1347 = vmatpush1.msra.mxu0 %v1068
  %1348 = vmatprep.subr.mxu0 0.0
  %1349 = vmatpush1.msra.mxu0 %v1069
  %1350 = vmatprep.subr.mxu0 0.0
  %1351 = vmatpush1.msra.mxu0 %v1070
  %1352 = vmatprep.subr.mxu0 0.0
  %1353 = vmatpush1.msra.mxu0 %v1071
  %1354 = vmatprep.subr.mxu0 0.0
  %1355 = vmatpush1.msra.mxu0 %v1072
  %1356 = vmatprep.subr.mxu0 0.0
  %1357 = vmatpush1.msra.mxu0 %v1073
  %1358 = vmatprep.subr.mxu0 0.0
  %1359 = vmatpush1.msra.mxu0 %v1074
  %1360 = vmatprep.mubr.f32.mxu0 %v878
  %1361 = vmatmul.mubr.f32.gmra.mrb[0].mxu0 %v877
  %v1362 = vpop.f32.mrb[0].mxu0
  %v1363 = vadd.f32 %v1213, %v1362
  %v1364 = vpop.f32.mrb[0].mxu0
  %1365 = vmatprep.mubr.f32.mxu0 %v886
  %1366 = vmatmul.mubr.f32.gmra.mrb[0].mxu0 %v885
  %v1367 = vpop.f32.mrb[0].mxu0
  %v1368 = vadd.f32 %v1218, %v1367
  %v1369 = vpop.f32.mrb[0].mxu0
  %1370 = vmatprep.mubr.f32.mxu0 %v894
  %1371 = vmatmul.mubr.f32.gmra.mrb[0].mxu0 %v893
  %v1372 = vpop.f32.mrb[0].mxu0
  %v1373 = vadd.f32 %v1223, %v1372
  %v1374 = vpop.f32.mrb[0].mxu0
  %1375 = vmatprep.mubr.f32.mxu0 %v902
  %1376 = vmatmul.mubr.f32.gmra.mrb[0].mxu0 %v901
  %v1377 = vpop.f32.mrb[0].mxu0
  %v1378 = vadd.f32 %v1228, %v1377
  %v1379 = vpop.f32.mrb[0].mxu0
  %1380 = vmatprep.mubr.f32.mxu0 %v910
  %1381 = vmatmul.mubr.f32.gmra.mrb[0].mxu0 %v909
  %v1382 = vpop.f32.mrb[0].mxu0
  %v1383 = vadd.f32 %v1233, %v1382
  %v1384 = vpop.f32.mrb[0].mxu0
  %1385 = vmatprep.mubr.f32.mxu0 %v918
  %1386 = vmatmul.mubr.f32.gmra.mrb[0].mxu0 %v917
  %v1387 = vpop.f32.mrb[0].mxu0
  %v1388 = vadd.f32 %v1238, %v1387
  %v1389 = vpop.f32.mrb[0].mxu0
  %1390 = vmatprep.mubr.f32.mxu0 %v926
  %1391 = vmatmul.mubr.f32.gmra.mrb[0].mxu0 %v925
  %v1392 = vpop.f32.mrb[0].mxu0
  %v1393 = vadd.f32 %v1243, %v1392
  %v1394 = vpop.f32.mrb[0].mxu0
  %1395 = vmatprep.mubr.f32.mxu0 %v934
  %1396 = vmatmul.mubr.f32.gmra.mrb[0].mxu0 %v933
  %v1397 = vpop.f32.mrb[0].mxu0
  %v1398 = vadd.f32 %v1248, %v1397
  %v1399 = vpop.f32.mrb[0].mxu0
  %1400 = vmatprep.mubr.f32.mxu0 %v942
  %1401 = vmatmul.mubr.f32.gmra.mrb[0].mxu0 %v941
  %v1402 = vpop.f32.mrb[0].mxu0
  %v1403 = vadd.f32 %v1253, %v1402
  %v1404 = vpop.f32.mrb[0].mxu0
  %1405 = vmatprep.mubr.f32.mxu0 %v950
  %1406 = vmatmul.mubr.f32.gmra.mrb[0].mxu0 %v949
  %v1407 = vpop.f32.mrb[0].mxu0
  %v1408 = vadd.f32 %v1258, %v1407
  %v1409 = vpop.f32.mrb[0].mxu0
  %1410 = vmatprep.mubr.f32.mxu0 %v958
  %1411 = vmatmul.mubr.f32.gmra.mrb[0].mxu0 %v957
  %v1412 = vpop.f32.mrb[0].mxu0
  %v1413 = vadd.f32 %v1263, %v1412
  %v1414 = vpop.f32.mrb[0].mxu0
  %1415 = vmatprep.mubr.f32.mxu0 %v966
  %1416 = vmatmul.mubr.f32.gmra.mrb[0].mxu0 %v965
  %v1417 = vpop.f32.mrb[0].mxu0
  %v1418 = vadd.f32 %v1268, %v1417
  %v1419 = vpop.f32.mrb[0].mxu0
  %1420 = vmatprep.mubr.f32.mxu0 %v974
  %1421 = vmatmul.mubr.f32.gmra.mrb[0].mxu0 %v973
  %v1422 = vpop.f32.mrb[0].mxu0
  %v1423 = vadd.f32 %v1273, %v1422
  %v1424 = vpop.f32.mrb[0].mxu0
  %1425 = vmatprep.mubr.f32.mxu0 %v982
  %1426 = vmatmul.mubr.f32.gmra.mrb[0].mxu0 %v981
  %v1427 = vpop.f32.mrb[0].mxu0
  %v1428 = vadd.f32 %v1278, %v1427
  %v1429 = vpop.f32.mrb[0].mxu0
  %1430 = vmatprep.mubr.f32.mxu0 %v990
  %1431 = vmatmul.mubr.f32.gmra.mrb[0].mxu0 %v989
  %v1432 = vpop.f32.mrb[0].mxu0
  %v1433 = vadd.f32 %v1283, %v1432
  %v1434 = vpop.f32.mrb[0].mxu0
  %1435 = vmatprep.mubr.f32.mxu0 %v998
  %1436 = vmatmul.mubr.f32.gmra.mrb[0].mxu0 %v997
  %v1437 = vpop.f32.mrb[0].mxu0
  %v1438 = vadd.f32 %v1288, %v1437
  %v1439 = vpop.f32.mrb[0].mxu0
  %1440 = vmatprep.mubr.f32.mxu0 %v1006
  %1441 = vmatmul.mubr.f32.gmra.mrb[0].mxu0 %v1005
  %v1442 = vpop.f32.mrb[0].mxu0
  %v1443 = vadd.f32 %v1293, %v1442
  %v1444 = vpop.f32.mrb[0].mxu0
  %1445 = vdwg.mxu0
  %1446 = vmatprep.subr.mxu0 0.0
  %1447 = vmatpush1.msra.mxu0 %v1075
  %1448 = vmatprep.subr.mxu0 0.0
  %1449 = vmatpush1.msra.mxu0 %v1076
  %1450 = vmatprep.subr.mxu0 0.0
  %1451 = vmatpush1.msra.mxu0 %v1077
  %1452 = vmatprep.subr.mxu0 0.0
  %1453 = vmatpush1.msra.mxu0 %v1078
  %1454 = vmatprep.subr.mxu0 0.0
  %1455 = vmatpush1.msra.mxu0 %v1079
  %1456 = vmatprep.subr.mxu0 0.0
  %1457 = vmatpush1.msra.mxu0 %v1080
  %1458 = vmatprep.subr.mxu0 0.0
  %1459 = vmatpush1.msra.mxu0 %v1081
  %1460 = vmatprep.subr.mxu0 0.0
  %1461 = vmatpush1.msra.mxu0 %v1082
  %1462 = vmatprep.subr.mxu0 0.0
  %1463 = vmatpush1.msra.mxu0 %v1083
  %1464 = vmatprep.subr.mxu0 0.0
  %1465 = vmatpush1.msra.mxu0 %v1084
  %1466 = vmatprep.subr.mxu0 0.0
  %1467 = vmatpush1.msra.mxu0 %v1085
  %1468 = vmatprep.subr.mxu0 0.0
  %1469 = vmatpush1.msra.mxu0 %v1086
  %1470 = vmatprep.subr.mxu0 0.0
  %1471 = vmatpush1.msra.mxu0 %v1087
  %1472 = vmatprep.subr.mxu0 0.0
  %1473 = vmatpush1.msra.mxu0 %v1088
  %1474 = vmatprep.subr.mxu0 0.0
  %1475 = vmatpush1.msra.mxu0 %v1089
  %1476 = vmatprep.subr.mxu0 0.0
  %1477 = vmatpush1.msra.mxu0 %v1090
  %1478 = vmatprep.subr.mxu0 0.0
  %1479 = vmatpush1.msra.mxu0 %v1091
  %1480 = vmatprep.subr.mxu0 0.0
  %1481 = vmatpush1.msra.mxu0 %v1092
  %1482 = vmatprep.subr.mxu0 0.0
  %1483 = vmatpush1.msra.mxu0 %v1093
  %1484 = vmatprep.subr.mxu0 0.0
  %1485 = vmatpush1.msra.mxu0 %v1094
  %1486 = vmatprep.subr.mxu0 0.0
  %1487 = vmatpush1.msra.mxu0 %v1095
  %1488 = vmatprep.subr.mxu0 0.0
  %1489 = vmatpush1.msra.mxu0 %v1096
  %1490 = vmatprep.subr.mxu0 0.0
  %1491 = vmatpush1.msra.mxu0 %v1097
  %1492 = vmatprep.subr.mxu0 0.0
  %1493 = vmatpush1.msra.mxu0 %v1098
  %1494 = vmatprep.subr.mxu0 0.0
  %1495 = vmatpush1.msra.mxu0 %v1099
  %1496 = vmatprep.subr.mxu0 0.0
  %1497 = vmatpush1.msra.mxu0 %v1100
  %1498 = vmatprep.subr.mxu0 0.0
  %1499 = vmatpush1.msra.mxu0 %v1101
  %1500 = vmatprep.subr.mxu0 0.0
  %1501 = vmatpush1.msra.mxu0 %v1102
  %1502 = vmatprep.subr.mxu0 0.0
  %1503 = vmatpush1.msra.mxu0 %v1103
  %1504 = vmatprep.subr.mxu0 0.0
  %1505 = vmatpush1.msra.mxu0 %v1104
  %1506 = vmatprep.subr.mxu0 0.0
  %1507 = vmatpush1.msra.mxu0 %v1105
  %1508 = vmatprep.subr.mxu0 0.0
  %1509 = vmatpush1.msra.mxu0 %v1106
  %1510 = vmatprep.mubr.f32.mxu0 %v880
  %1511 = vmatmul.mubr.f32.gmra.mrb[0].mxu0 %v879
  %v1512 = vpop.f32.mrb[0].mxu0
  %v1513 = vadd.f32 %v1363, %v1512
  %v1514 = vpop.f32.mrb[0].mxu0
  %1515 = vmatprep.mubr.f32.mxu0 %v888
  %1516 = vmatmul.mubr.f32.gmra.mrb[0].mxu0 %v887
  %v1517 = vpop.f32.mrb[0].mxu0
  %v1518 = vadd.f32 %v1368, %v1517
  %v1519 = vpop.f32.mrb[0].mxu0
  %1520 = vmatprep.mubr.f32.mxu0 %v896
  %1521 = vmatmul.mubr.f32.gmra.mrb[0].mxu0 %v895
  %v1522 = vpop.f32.mrb[0].mxu0
  %v1523 = vadd.f32 %v1373, %v1522
  %v1524 = vpop.f32.mrb[0].mxu0
  %1525 = vmatprep.mubr.f32.mxu0 %v904
  %1526 = vmatmul.mubr.f32.gmra.mrb[0].mxu0 %v903
  %v1527 = vpop.f32.mrb[0].mxu0
  %v1528 = vadd.f32 %v1378, %v1527
  %v1529 = vpop.f32.mrb[0].mxu0
  %1530 = vmatprep.mubr.f32.mxu0 %v912
  %1531 = vmatmul.mubr.f32.gmra.mrb[0].mxu0 %v911
  %v1532 = vpop.f32.mrb[0].mxu0
  %v1533 = vadd.f32 %v1383, %v1532
  %v1534 = vpop.f32.mrb[0].mxu0
  %1535 = vmatprep.mubr.f32.mxu0 %v920
  %1536 = vmatmul.mubr.f32.gmra.mrb[0].mxu0 %v919
  %v1537 = vpop.f32.mrb[0].mxu0
  %v1538 = vadd.f32 %v1388, %v1537
  %v1539 = vpop.f32.mrb[0].mxu0
  %1540 = vmatprep.mubr.f32.mxu0 %v928
  %1541 = vmatmul.mubr.f32.gmra.mrb[0].mxu0 %v927
  %v1542 = vpop.f32.mrb[0].mxu0
  %v1543 = vadd.f32 %v1393, %v1542
  %v1544 = vpop.f32.mrb[0].mxu0
  %1545 = vmatprep.mubr.f32.mxu0 %v936
  %1546 = vmatmul.mubr.f32.gmra.mrb[0].mxu0 %v935
  %v1547 = vpop.f32.mrb[0].mxu0
  %v1548 = vadd.f32 %v1398, %v1547
  %v1549 = vpop.f32.mrb[0].mxu0
  %1550 = vmatprep.mubr.f32.mxu0 %v944
  %1551 = vmatmul.mubr.f32.gmra.mrb[0].mxu0 %v943
  %v1552 = vpop.f32.mrb[0].mxu0
  %v1553 = vadd.f32 %v1403, %v1552
  %v1554 = vpop.f32.mrb[0].mxu0
  %1555 = vmatprep.mubr.f32.mxu0 %v952
  %1556 = vmatmul.mubr.f32.gmra.mrb[0].mxu0 %v951
  %v1557 = vpop.f32.mrb[0].mxu0
  %v1558 = vadd.f32 %v1408, %v1557
  %v1559 = vpop.f32.mrb[0].mxu0
  %1560 = vmatprep.mubr.f32.mxu0 %v960
  %1561 = vmatmul.mubr.f32.gmra.mrb[0].mxu0 %v959
  %v1562 = vpop.f32.mrb[0].mxu0
  %v1563 = vadd.f32 %v1413, %v1562
  %v1564 = vpop.f32.mrb[0].mxu0
  %1565 = vmatprep.mubr.f32.mxu0 %v968
  %1566 = vmatmul.mubr.f32.gmra.mrb[0].mxu0 %v967
  %v1567 = vpop.f32.mrb[0].mxu0
  %v1568 = vadd.f32 %v1418, %v1567
  %v1569 = vpop.f32.mrb[0].mxu0
  %1570 = vmatprep.mubr.f32.mxu0 %v976
  %1571 = vmatmul.mubr.f32.gmra.mrb[0].mxu0 %v975
  %v1572 = vpop.f32.mrb[0].mxu0
  %v1573 = vadd.f32 %v1423, %v1572
  %v1574 = vpop.f32.mrb[0].mxu0
  %1575 = vmatprep.mubr.f32.mxu0 %v984
  %1576 = vmatmul.mubr.f32.gmra.mrb[0].mxu0 %v983
  %v1577 = vpop.f32.mrb[0].mxu0
  %v1578 = vadd.f32 %v1428, %v1577
  %v1579 = vpop.f32.mrb[0].mxu0
  %1580 = vmatprep.mubr.f32.mxu0 %v992
  %1581 = vmatmul.mubr.f32.gmra.mrb[0].mxu0 %v991
  %v1582 = vpop.f32.mrb[0].mxu0
  %v1583 = vadd.f32 %v1433, %v1582
  %v1584 = vpop.f32.mrb[0].mxu0
  %1585 = vmatprep.mubr.f32.mxu0 %v1000
  %1586 = vmatmul.mubr.f32.gmra.mrb[0].mxu0 %v999
  %v1587 = vpop.f32.mrb[0].mxu0
  %v1588 = vadd.f32 %v1438, %v1587
  %v1589 = vpop.f32.mrb[0].mxu0
  %1590 = vmatprep.mubr.f32.mxu0 %v1008
  %1591 = vmatmul.mubr.f32.gmra.mrb[0].mxu0 %v1007
  %v1592 = vpop.f32.mrb[0].mxu0
  %v1593 = vadd.f32 %v1443, %v1592
  %v1594 = vpop.f32.mrb[0].mxu0
  %1595 = vdwg.mxu0
  %1596 = vmatprep.subr.mxu0 0.0
  %1597 = vmatpush1.msra.mxu0 %v1107
  %1598 = vmatprep.subr.mxu0 0.0
  %1599 = vmatpush1.msra.mxu0 %v1108
  %1600 = vmatprep.subr.mxu0 0.0
  %1601 = vmatpush1.msra.mxu0 %v1109
  %1602 = vmatprep.subr.mxu0 0.0
  %1603 = vmatpush1.msra.mxu0 %v1110
  %1604 = vmatprep.subr.mxu0 0.0
  %1605 = vmatpush1.msra.mxu0 %v1111
  %1606 = vmatprep.subr.mxu0 0.0
  %1607 = vmatpush1.msra.mxu0 %v1112
  %1608 = vmatprep.subr.mxu0 0.0
  %1609 = vmatpush1.msra.mxu0 %v1113
  %1610 = vmatprep.subr.mxu0 0.0
  %1611 = vmatpush1.msra.mxu0 %v1114
  %1612 = vmatprep.subr.mxu0 0.0
  %1613 = vmatpush1.msra.mxu0 %v1115
  %1614 = vmatprep.subr.mxu0 0.0
  %1615 = vmatpush1.msra.mxu0 %v1116
  %1616 = vmatprep.subr.mxu0 0.0
  %1617 = vmatpush1.msra.mxu0 %v1117
  %1618 = vmatprep.subr.mxu0 0.0
  %1619 = vmatpush1.msra.mxu0 %v1118
  %1620 = vmatprep.subr.mxu0 0.0
  %1621 = vmatpush1.msra.mxu0 %v1119
  %1622 = vmatprep.subr.mxu0 0.0
  %1623 = vmatpush1.msra.mxu0 %v1120
  %1624 = vmatprep.subr.mxu0 0.0
  %1625 = vmatpush1.msra.mxu0 %v1121
  %1626 = vmatprep.subr.mxu0 0.0
  %1627 = vmatpush1.msra.mxu0 %v1122
  %1628 = vmatprep.subr.mxu0 0.0
  %1629 = vmatpush1.msra.mxu0 %v1123
  %1630 = vmatprep.subr.mxu0 0.0
  %1631 = vmatpush1.msra.mxu0 %v1124
  %1632 = vmatprep.subr.mxu0 0.0
  %1633 = vmatpush1.msra.mxu0 %v1125
  %1634 = vmatprep.subr.mxu0 0.0
  %1635 = vmatpush1.msra.mxu0 %v1126
  %1636 = vmatprep.subr.mxu0 0.0
  %1637 = vmatpush1.msra.mxu0 %v1127
  %1638 = vmatprep.subr.mxu0 0.0
  %1639 = vmatpush1.msra.mxu0 %v1128
  %1640 = vmatprep.subr.mxu0 0.0
  %1641 = vmatpush1.msra.mxu0 %v1129
  %1642 = vmatprep.subr.mxu0 0.0
  %1643 = vmatpush1.msra.mxu0 %v1130
  %1644 = vmatprep.subr.mxu0 0.0
  %1645 = vmatpush1.msra.mxu0 %v1131
  %1646 = vmatprep.subr.mxu0 0.0
  %1647 = vmatpush1.msra.mxu0 %v1132
  %1648 = vmatprep.subr.mxu0 0.0
  %1649 = vmatpush1.msra.mxu0 %v1133
  %1650 = vmatprep.subr.mxu0 0.0
  %1651 = vmatpush1.msra.mxu0 %v1134
  %1652 = vmatprep.subr.mxu0 0.0
  %1653 = vmatpush1.msra.mxu0 %v1135
  %1654 = vmatprep.subr.mxu0 0.0
  %1655 = vmatpush1.msra.mxu0 %v1136
  %1656 = vmatprep.subr.mxu0 0.0
  %1657 = vmatpush1.msra.mxu0 %v1137
  %1658 = vmatprep.subr.mxu0 0.0
  %1659 = vmatpush1.msra.mxu0 %v1138
  %1660 = vmatprep.mubr.f32.mxu0 %v882
  %1661 = vmatmul.mubr.f32.gmra.mrb[0].mxu0 %v881
  %v1662 = vpop.f32.mrb[0].mxu0
  %v1663 = vadd.f32 %v1513, %v1662
  %v1664 = vpop.f32.mrb[0].mxu0
  %1665 = vmatprep.mubr.f32.mxu0 %v890
  %1666 = vmatmul.mubr.f32.gmra.mrb[0].mxu0 %v889
  %v1667 = vpop.f32.mrb[0].mxu0
  %v1668 = vadd.f32 %v1518, %v1667
  %v1669 = vpop.f32.mrb[0].mxu0
  %1670 = vmatprep.mubr.f32.mxu0 %v898
  %1671 = vmatmul.mubr.f32.gmra.mrb[0].mxu0 %v897
  %v1672 = vpop.f32.mrb[0].mxu0
  %v1673 = vadd.f32 %v1523, %v1672
  %v1674 = vpop.f32.mrb[0].mxu0
  %1675 = vmatprep.mubr.f32.mxu0 %v906
  %1676 = vmatmul.mubr.f32.gmra.mrb[0].mxu0 %v905
  %v1677 = vpop.f32.mrb[0].mxu0
  %v1678 = vadd.f32 %v1528, %v1677
  %v1679 = vpop.f32.mrb[0].mxu0
  %1680 = vmatprep.mubr.f32.mxu0 %v914
  %1681 = vmatmul.mubr.f32.gmra.mrb[0].mxu0 %v913
  %v1682 = vpop.f32.mrb[0].mxu0
  %v1683 = vadd.f32 %v1533, %v1682
  %v1684 = vpop.f32.mrb[0].mxu0
  %1685 = vmatprep.mubr.f32.mxu0 %v922
  %1686 = vmatmul.mubr.f32.gmra.mrb[0].mxu0 %v921
  %v1687 = vpop.f32.mrb[0].mxu0
  %v1688 = vadd.f32 %v1538, %v1687
  %v1689 = vpop.f32.mrb[0].mxu0
  %1690 = vmatprep.mubr.f32.mxu0 %v930
  %1691 = vmatmul.mubr.f32.gmra.mrb[0].mxu0 %v929
  %v1692 = vpop.f32.mrb[0].mxu0
  %v1693 = vadd.f32 %v1543, %v1692
  %v1694 = vpop.f32.mrb[0].mxu0
  %1695 = vmatprep.mubr.f32.mxu0 %v938
  %1696 = vmatmul.mubr.f32.gmra.mrb[0].mxu0 %v937
  %v1697 = vpop.f32.mrb[0].mxu0
  %v1698 = vadd.f32 %v1548, %v1697
  %v1699 = vpop.f32.mrb[0].mxu0
  %1700 = vmatprep.mubr.f32.mxu0 %v946
  %1701 = vmatmul.mubr.f32.gmra.mrb[0].mxu0 %v945
  %v1702 = vpop.f32.mrb[0].mxu0
  %v1703 = vadd.f32 %v1553, %v1702
  %v1704 = vpop.f32.mrb[0].mxu0
  %1705 = vmatprep.mubr.f32.mxu0 %v954
  %1706 = vmatmul.mubr.f32.gmra.mrb[0].mxu0 %v953
  %v1707 = vpop.f32.mrb[0].mxu0
  %v1708 = vadd.f32 %v1558, %v1707
  %v1709 = vpop.f32.mrb[0].mxu0
  %1710 = vmatprep.mubr.f32.mxu0 %v962
  %1711 = vmatmul.mubr.f32.gmra.mrb[0].mxu0 %v961
  %v1712 = vpop.f32.mrb[0].mxu0
  %v1713 = vadd.f32 %v1563, %v1712
  %v1714 = vpop.f32.mrb[0].mxu0
  %1715 = vmatprep.mubr.f32.mxu0 %v970
  %1716 = vmatmul.mubr.f32.gmra.mrb[0].mxu0 %v969
  %v1717 = vpop.f32.mrb[0].mxu0
  %v1718 = vadd.f32 %v1568, %v1717
  %v1719 = vpop.f32.mrb[0].mxu0
  %1720 = vmatprep.mubr.f32.mxu0 %v978
  %1721 = vmatmul.mubr.f32.gmra.mrb[0].mxu0 %v977
  %v1722 = vpop.f32.mrb[0].mxu0
  %v1723 = vadd.f32 %v1573, %v1722
  %v1724 = vpop.f32.mrb[0].mxu0
  %1725 = vmatprep.mubr.f32.mxu0 %v986
  %1726 = vmatmul.mubr.f32.gmra.mrb[0].mxu0 %v985
  %v1727 = vpop.f32.mrb[0].mxu0
  %v1728 = vadd.f32 %v1578, %v1727
  %v1729 = vpop.f32.mrb[0].mxu0
  %1730 = vmatprep.mubr.f32.mxu0 %v994
  %1731 = vmatmul.mubr.f32.gmra.mrb[0].mxu0 %v993
  %v1732 = vpop.f32.mrb[0].mxu0
  %v1733 = vadd.f32 %v1583, %v1732
  %v1734 = vpop.f32.mrb[0].mxu0
  %1735 = vmatprep.mubr.f32.mxu0 %v1002
  %1736 = vmatmul.mubr.f32.gmra.mrb[0].mxu0 %v1001
  %v1737 = vpop.f32.mrb[0].mxu0
  %v1738 = vadd.f32 %v1588, %v1737
  %v1739 = vpop.f32.mrb[0].mxu0
  %1740 = vmatprep.mubr.f32.mxu0 %v1010
  %1741 = vmatmul.mubr.f32.gmra.mrb[0].mxu0 %v1009
  %v1742 = vpop.f32.mrb[0].mxu0
  %v1743 = vadd.f32 %v1593, %v1742
  %v1744 = vpop.f32.mrb[0].mxu0
  %1745 = vdwg.mxu0
  %vm1746 = vcmask 261120
  %1747 = vst.msk [vmem:[%s5] sm:$0xff] %vm1746, %v1663
  %1748 = vst.msk [vmem:[%s5 + $0x8] sm:$0xff] %vm1746, %v1668
  %1749 = vst.msk [vmem:[%s5 + $0x10] sm:$0xff] %vm1746, %v1673
  %1750 = vst.msk [vmem:[%s5 + $0x18] sm:$0xff] %vm1746, %v1678
  %1751 = vst.msk [vmem:[%s5 + $0x20] sm:$0xff] %vm1746, %v1683
  %1752 = vst.msk [vmem:[%s5 + $0x28] sm:$0xff] %vm1746, %v1688
  %1753 = vst.msk [vmem:[%s5 + $0x30] sm:$0xff] %vm1746, %v1693
  %1754 = vst.msk [vmem:[%s5 + $0x38] sm:$0xff] %vm1746, %v1698
  %1755 = vst.msk [vmem:[%s5 + $0x40] sm:$0xff] %vm1746, %v1703
  %1756 = vst.msk [vmem:[%s5 + $0x48] sm:$0xff] %vm1746, %v1708
  %1757 = vst.msk [vmem:[%s5 + $0x50] sm:$0xff] %vm1746, %v1713
  %1758 = vst.msk [vmem:[%s5 + $0x58] sm:$0xff] %vm1746, %v1718
  %1759 = vst.msk [vmem:[%s5 + $0x60] sm:$0xff] %vm1746, %v1723
  %1760 = vst.msk [vmem:[%s5 + $0x68] sm:$0xff] %vm1746, %v1728
  %1761 = vst.msk [vmem:[%s5 + $0x70] sm:$0xff] %vm1746, %v1733
  %1762 = vst.msk [vmem:[%s5 + $0x78] sm:$0xff] %vm1746, %v1738
  %1763 = vst.msk [vmem:[%s5 + $0x80] sm:$0xff] %vm1746, %v1743
  // Predicated region
  $region22: #{tpu_custom_call.1} parent=0 // pred_check
    _
  $region23: #{tpu_custom_call.1} parent=0 // pred_check_branch
    %1765 = sbr.rel (0) target = $region25
  $region24: #{tpu_custom_call.1} parent=0 // pred_region
    _
  $region25: #{tpu_custom_call.1} parent=0 // pred_fallthru
    _
  // Predicated region
  $region26: #{tpu_custom_call.1} parent=0 // pred_check
    _
  $region27: #{tpu_custom_call.1} parent=0 // pred_check_branch
    %1767 = sbr.rel (0) target = $region29
  $region28: #{tpu_custom_call.1} parent=0 // pred_region
    _
  $region29: #{tpu_custom_call.1} parent=0 // pred_fallthru
    _

</llo_original>
